<compile_context>
chip_gen: v7x
topology: tpu7x:2x2x1
jax: 0.10.0
libtpu: 0.0.40
codegen_flags: <defaults>
</compile_context>

<pallas_src>
import jax
import jax.numpy as jnp
from jax import lax
from jax.experimental import pallas as pl
from jax.experimental.pallas import tpu as pltpu

# ---- synthetic BERT-mini config -------------------------------------------
HIDDEN = 32
NUM_HEADS = 2
HEAD_DIM = HIDDEN // NUM_HEADS
INTERMEDIATE = 64
VOCAB = 100
MAX_POS = 64
NUM_CLASSES = 16
LN_EPS = 1e-12


def _layer_norm(x, g, b):
    m = jnp.mean(x, axis=-1, keepdims=True)
    v = jnp.mean(jnp.square(x - m), axis=-1, keepdims=True)
    return (x - m) * lax.rsqrt(v + LN_EPS) * g + b


# ---------------------------------------------------------------------------
# Fused kernel: BERT encoder layer (CLS queries only) + pooler + SetPrd head.
# Rows of emb_ref are token-major / batch-minor: row r = (token r//B, batch r%B),
# so the B CLS rows are rows [0, B).
# ---------------------------------------------------------------------------
def setprd_kernel(emb_ref, mask_ref, onehot_ref,
                  w_pack_ref, w2_ref, vec_ref, bias_ref,
                  out_ref):
    SB, H = emb_ref.shape            # (S*B, HIDDEN)
    B, C = onehot_ref.shape          # (batch, num_classes)
    NH = NUM_HEADS
    HD = H // NH
    I = w2_ref.shape[0]              # intermediate size

    # ---- unpack packed params (static ref slices, no runtime cost) --------
    w_q = w_pack_ref[:, 0:H]                        # (H, H)
    w_kv = w_pack_ref[:, H:3 * H]                   # (H, 2H)
    w_o = w_pack_ref[:, 3 * H:4 * H]                # (H, H)
    w_1 = w_pack_ref[:, 4 * H:4 * H + I]            # (H, I)
    w_p = w_pack_ref[:, 4 * H + I:5 * H + I]        # (H, H)
    w_dec = w_pack_ref[:, 5 * H + I:5 * H + I + C]  # (H, C)

    emb_g = vec_ref[0:1, :]
    emb_b = vec_ref[1:2, :]
    ln1_g = vec_ref[2:3, :]
    ln1_b = vec_ref[3:4, :]
    ln2_g = vec_ref[4:5, :]
    ln2_b = vec_ref[5:6, :]
    b_o = vec_ref[6:7, :]
    b_2 = vec_ref[7:8, :]
    b_p = vec_ref[8:9, :]
    b_q = bias_ref[0:1, 0:H]
    b_kv = bias_ref[0:1, H:3 * H]
    b_1 = bias_ref[1:2, 0:I]
    b_dec = bias_ref[2:3, 0:C]

    # ---- embedding LayerNorm (all rows feed K/V) ---------------------------
    x = _layer_norm(emb_ref[...], emb_g, emb_b)     # (SB, H)
    x_cls = x[0:B, :]                               # (B, H)  CLS rows are first

    # ---- projections: K/V from all rows, Q from CLS rows only -------------
    kv = jnp.dot(x, w_kv, preferred_element_type=jnp.float32) + b_kv   # (SB, 2H)
    k = kv[:, 0:H]
    v = kv[:, H:2 * H]
    q = jnp.dot(x_cls, w_q, preferred_element_type=jnp.float32) + b_q  # (B, H)

    # ---- additive attention mask: key padding + same-batch mask -----------
    rows = lax.broadcasted_iota(jnp.int32, (B, SB), 0)       # query's batch id
    cols = lax.broadcasted_iota(jnp.int32, (B, SB), 1)
    same_batch = (cols % B) == rows                          # key's batch id
    key_mask = jnp.broadcast_to(mask_ref[...], (B, SB))      # (1,SB)->(B,SB)
    add_mask = jnp.where(same_batch, 0.0, -1.0e4) + (key_mask - 1.0) * 1.0e4

    # ---- multi-head attention, CLS queries only ----------------------------
    # Heads via constant lane masks: (q*m_h) @ k^T == q_h @ k_h^T and
    # sum_h p_h @ (v*m_h) == concat_h(ctx_h).  No lane slices, no concat.
    scale = 1.0 / (HD ** 0.5)
    lane = lax.broadcasted_iota(jnp.int32, (1, H), 1)
    ctx = jnp.zeros((B, H), jnp.float32)
    for h in range(NH):                             # static unroll, NH == 2
        hm = jnp.where((lane >= h * HD) & (lane < (h + 1) * HD), 1.0, 0.0)
        s = lax.dot_general(q * hm, k, (((1,), (1,)), ((), ())),
                            preferred_element_type=jnp.float32) * scale
        s = s + add_mask
        s = s - jnp.max(s, axis=-1, keepdims=True)
        p = jnp.exp(s)
        p = p * pl.reciprocal(jnp.sum(p, axis=-1, keepdims=True), approx=False)
        ctx = ctx + jnp.dot(p, v * hm, preferred_element_type=jnp.float32)

    attn_out = jnp.dot(ctx, w_o, preferred_element_type=jnp.float32) + b_o
    h1 = _layer_norm(x_cls + attn_out, ln1_g, ln1_b)          # (B, H)

    # ---- FFN + post-LN + pooler (B rows only) ------------------------------
    ffn = jnp.dot(h1, w_1, preferred_element_type=jnp.float32) + b_1
    ffn = jax.nn.gelu(ffn)
    ffn = jnp.dot(ffn, w2_ref[...], preferred_element_type=jnp.float32) + b_2
    h2 = _layer_norm(h1 + ffn, ln2_g, ln2_b)                  # (B, H)

    pooled = jnp.tanh(jnp.dot(h2, w_p, preferred_element_type=jnp.float32) + b_p)

    # ---- SetPrd head: decoder + softmax stats + torch.max + cross-entropy -
    logits = jnp.dot(pooled, w_dec, preferred_element_type=jnp.float32) + b_dec
    m = jnp.max(logits, axis=1, keepdims=True)
    e = jnp.exp(logits - m)
    denom = jnp.sum(e, axis=1, keepdims=True)

    # max(softmax(logits)) == 1/denom ; argmax(softmax) == argmax(logits)
    max_v = pl.reciprocal(denom, approx=False)                       # (B, 1)
    ids = lax.broadcasted_iota(jnp.int32, logits.shape, 1)
    arg = jnp.min(jnp.where(logits == m, ids, jnp.int32(C)),
                  axis=1, keepdims=True)                             # (B, 1)

    # F.cross_entropy(class_logits, targets), mean reduction
    lse = m + jnp.log(denom)
    nll = lse - jnp.sum(onehot_ref[...] * logits, axis=1, keepdims=True)
    loss = jnp.mean(nll, keepdims=True)                              # (1, 1)

    # ---- single packed output slab (one zero fill + one masked store) ------
    pack = jnp.concatenate(
        [max_v, arg.astype(jnp.float32), jnp.broadcast_to(loss, (B, 1))], axis=1)
    out_ref[...] = jnp.zeros_like(out_ref)
    out_ref[0:B, 0:3] = pack


# ---------------------------------------------------------------------------
# Wrapper
# ---------------------------------------------------------------------------
def set_prd_forward(params, input_ids, attention_mask, targets=None):
    B, S = input_ids.shape
    H, C, I = HIDDEN, NUM_CLASSES, INTERMEDIATE
    assert B <= 8, "output slab sized for B <= 8"

    # Embedding lookup (glue): word + position + token_type(=0); LN is in-kernel.
    emb = (jnp.take(params["word_emb"], input_ids, axis=0)
           + params["pos_emb"][:S][None, :, :]
           + params["type_emb"][0][None, None, :]).astype(jnp.float32)
    # Token-major / batch-minor layout: CLS rows of all batches land in rows [0,B).
    emb_r = jnp.transpose(emb, (1, 0, 2)).reshape(S * B, H)
    mask_flat = attention_mask.astype(jnp.float32).T.reshape(1, S * B)

    # Pack the 20 encoder/head parameter arrays into 4 (XLA-side, once/call).
    w_pack = jnp.concatenate(
        [params["wq"], params["wk"], params["wv"], params["wo"],
         params["w1"], params["wp"], params["wdec"]], axis=1)       # (H, 240)
    vec_pack = jnp.concatenate(
        [params["emb_g"], params["emb_b"], params["ln1_g"], params["ln1_b"],
         params["ln2_g"], params["ln2_b"], params["bo"], params["b2"],
         params["bp"]], axis=0)                                     # (9, H)
    bias_pack = jnp.zeros((3, 3 * H), jnp.float32)
    bias_pack = bias_pack.at[0, :3 * H].set(
        jnp.concatenate([params["bq"], params["bk"], params["bv"]], axis=1)[0])
    bias_pack = bias_pack.at[1, :I].set(params["b1"][0])
    bias_pack = bias_pack.at[2, :C].set(params["bdec"][0])

    if targets is None:
        # TODO(synk): the kernel still evaluates the CE epilogue on a zero
        # one-hot in this branch; the scalar is discarded by the wrapper.
        onehot = jnp.zeros((B, C), jnp.float32)
    else:
        onehot = jax.nn.one_hot(targets.astype(jnp.int32), C, dtype=jnp.float32)

    vmem = pl.BlockSpec(memory_space=pltpu.MemorySpace.VMEM)
    out = pl.pallas_call(
        setprd_kernel,
        out_shape=jax.ShapeDtypeStruct((8, 128), jnp.float32),
        in_specs=[vmem] * 7,
        out_specs=vmem,
    )(emb_r, mask_flat, onehot, w_pack, params["w2"], vec_pack, bias_pack)

    best_values = out[:B, 0]
    best_indices = out[:B, 1].astype(jnp.int32)
    best_outputs = (best_values, best_indices)   # like torch.max(outputs, 1)
    if targets is None:
        return best_outputs
    loss = out[0, 2]
    return loss, best_outputs


# ---------------------------------------------------------------------------
# Deterministic parameter init (synthetic; no checkpoint load)
# ---------------------------------------------------------------------------
def init_params(key):
    ks = jax.random.split(key, 12)

    def dense(k, fi, fo):
        return 0.02 * jax.random.normal(k, (fi, fo), jnp.float32)

    p = {
        "word_emb": 0.02 * jax.random.normal(ks[0], (VOCAB, HIDDEN), jnp.float32),
        "pos_emb": 0.02 * jax.random.normal(ks[1], (MAX_POS, HIDDEN), jnp.float32),
        "type_emb": 0.02 * jax.random.normal(ks[2], (2, HIDDEN), jnp.float32),
        "emb_g": jnp.ones((1, HIDDEN), jnp.float32),
        "emb_b": jnp.zeros((1, HIDDEN), jnp.float32),
        "wq": dense(ks[3], HIDDEN, HIDDEN), "bq": jnp.zeros((1, HIDDEN), jnp.float32),
        "wk": dense(ks[4], HIDDEN, HIDDEN), "bk": jnp.zeros((1, HIDDEN), jnp.float32),
        "wv": dense(ks[5], HIDDEN, HIDDEN), "bv": jnp.zeros((1, HIDDEN), jnp.float32),
        "wo": dense(ks[6], HIDDEN, HIDDEN), "bo": jnp.zeros((1, HIDDEN), jnp.float32),
        "ln1_g": jnp.ones((1, HIDDEN), jnp.float32),
        "ln1_b": jnp.zeros((1, HIDDEN), jnp.float32),
        "w1": dense(ks[7], HIDDEN, INTERMEDIATE),
        "b1": jnp.zeros((1, INTERMEDIATE), jnp.float32),
        "w2": dense(ks[8], INTERMEDIATE, HIDDEN),
        "b2": jnp.zeros((1, HIDDEN), jnp.float32),
        "ln2_g": jnp.ones((1, HIDDEN), jnp.float32),
        "ln2_b": jnp.zeros((1, HIDDEN), jnp.float32),
        "wp": dense(ks[9], HIDDEN, HIDDEN), "bp": jnp.zeros((1, HIDDEN), jnp.float32),
        # SetPrd.decoder = nn.Linear(hidden_size, num_classes)
        "wdec": dense(ks[10], HIDDEN, NUM_CLASSES),
        "bdec": 0.02 * jax.random.normal(ks[11], (1, NUM_CLASSES), jnp.float32),
    }
    return p


if __name__ == "__main__":
    B, S = 2, 8
    key = jax.random.PRNGKey(0)
    kp, kid, ktgt = jax.random.split(key, 3)

    params = init_params(kp)
    input_ids = jax.random.randint(kid, (B, S), 0, VOCAB, dtype=jnp.int32)
    attention_mask = jnp.ones((B, S), jnp.float32).at[1, 6:].set(0.0)  # ragged batch
    targets = jax.random.randint(ktgt, (B,), 0, NUM_CLASSES, dtype=jnp.int32)

    # TODO(synk): pretrained BertModel weights are replaced by the deterministic
    # synthetic single-layer encoder above (no checkpoint loading allowed).
    loss, (best_values, best_indices) = set_prd_forward(
        params, input_ids, attention_mask, targets)
    jax.block_until_ready((loss, best_values, best_indices))
    print("KERNEL_OK")
</pallas_src>

<mosaic_0001>
module attributes {stable_mosaic.version = 11 : i64} {
  func.func @setprd_kernel(%arg0: memref<16x32xf32, #tpu.memory_space<vmem>>, %arg1: memref<1x16xf32, #tpu.memory_space<vmem>>, %arg2: memref<2x16xf32, #tpu.memory_space<vmem>>, %arg3: memref<32x240xf32, #tpu.memory_space<vmem>>, %arg4: memref<64x32xf32, #tpu.memory_space<vmem>>, %arg5: memref<9x32xf32, #tpu.memory_space<vmem>>, %arg6: memref<3x96xf32, #tpu.memory_space<vmem>>, %arg7: memref<8x128xf32, #tpu.memory_space<vmem>>) attributes {dimension_semantics = [], scalar_prefetch = 0 : i64, scratch_operands = 0 : i64, tpu.core_type = #tpu.core_type<tc>} {
    %c0 = arith.constant 0 : index
    %c0_0 = arith.constant 0 : index
    %0 = vector.load %arg3[%c0, %c0_0] : memref<32x240xf32, #tpu.memory_space<vmem>>, vector<32x32xf32>
    %c0_1 = arith.constant 0 : index
    %c32 = arith.constant 32 : index
    %1 = vector.load %arg3[%c0_1, %c32] : memref<32x240xf32, #tpu.memory_space<vmem>>, vector<32x64xf32>
    %c0_2 = arith.constant 0 : index
    %c96 = arith.constant 96 : index
    %2 = vector.load %arg3[%c0_2, %c96] : memref<32x240xf32, #tpu.memory_space<vmem>>, vector<32x32xf32>
    %c0_3 = arith.constant 0 : index
    %c128 = arith.constant 128 : index
    %3 = vector.load %arg3[%c0_3, %c128] : memref<32x240xf32, #tpu.memory_space<vmem>>, vector<32x64xf32>
    %c0_4 = arith.constant 0 : index
    %c192 = arith.constant 192 : index
    %4 = vector.load %arg3[%c0_4, %c192] : memref<32x240xf32, #tpu.memory_space<vmem>>, vector<32x32xf32>
    %c0_5 = arith.constant 0 : index
    %c224 = arith.constant 224 : index
    %5 = vector.load %arg3[%c0_5, %c224] : memref<32x240xf32, #tpu.memory_space<vmem>>, vector<32x16xf32>
    %c0_6 = arith.constant 0 : index
    %c0_7 = arith.constant 0 : index
    %6 = vector.load %arg5[%c0_6, %c0_7] : memref<9x32xf32, #tpu.memory_space<vmem>>, vector<1x32xf32>
    %c1 = arith.constant 1 : index
    %c0_8 = arith.constant 0 : index
    %7 = vector.load %arg5[%c1, %c0_8] : memref<9x32xf32, #tpu.memory_space<vmem>>, vector<1x32xf32>
    %c2 = arith.constant 2 : index
    %c0_9 = arith.constant 0 : index
    %8 = vector.load %arg5[%c2, %c0_9] : memref<9x32xf32, #tpu.memory_space<vmem>>, vector<1x32xf32>
    %c3 = arith.constant 3 : index
    %c0_10 = arith.constant 0 : index
    %9 = vector.load %arg5[%c3, %c0_10] : memref<9x32xf32, #tpu.memory_space<vmem>>, vector<1x32xf32>
    %c4 = arith.constant 4 : index
    %c0_11 = arith.constant 0 : index
    %10 = vector.load %arg5[%c4, %c0_11] : memref<9x32xf32, #tpu.memory_space<vmem>>, vector<1x32xf32>
    %c5 = arith.constant 5 : index
    %c0_12 = arith.constant 0 : index
    %11 = vector.load %arg5[%c5, %c0_12] : memref<9x32xf32, #tpu.memory_space<vmem>>, vector<1x32xf32>
    %c6 = arith.constant 6 : index
    %c0_13 = arith.constant 0 : index
    %12 = vector.load %arg5[%c6, %c0_13] : memref<9x32xf32, #tpu.memory_space<vmem>>, vector<1x32xf32>
    %c7 = arith.constant 7 : index
    %c0_14 = arith.constant 0 : index
    %13 = vector.load %arg5[%c7, %c0_14] : memref<9x32xf32, #tpu.memory_space<vmem>>, vector<1x32xf32>
    %c8 = arith.constant 8 : index
    %c0_15 = arith.constant 0 : index
    %14 = vector.load %arg5[%c8, %c0_15] : memref<9x32xf32, #tpu.memory_space<vmem>>, vector<1x32xf32>
    %c0_16 = arith.constant 0 : index
    %c0_17 = arith.constant 0 : index
    %15 = vector.load %arg6[%c0_16, %c0_17] : memref<3x96xf32, #tpu.memory_space<vmem>>, vector<1x32xf32>
    %c0_18 = arith.constant 0 : index
    %c32_19 = arith.constant 32 : index
    %16 = vector.load %arg6[%c0_18, %c32_19] : memref<3x96xf32, #tpu.memory_space<vmem>>, vector<1x64xf32>
    %c1_20 = arith.constant 1 : index
    %c0_21 = arith.constant 0 : index
    %17 = vector.load %arg6[%c1_20, %c0_21] : memref<3x96xf32, #tpu.memory_space<vmem>>, vector<1x64xf32>
    %c2_22 = arith.constant 2 : index
    %c0_23 = arith.constant 0 : index
    %18 = vector.load %arg6[%c2_22, %c0_23] : memref<3x96xf32, #tpu.memory_space<vmem>>, vector<1x16xf32>
    %c0_24 = arith.constant 0 : index
    %c0_25 = arith.constant 0 : index
    %19 = vector.load %arg0[%c0_24, %c0_25] : memref<16x32xf32, #tpu.memory_space<vmem>>, vector<16x32xf32>
    %cst = arith.constant dense<0.000000e+00> : vector<16xf32>
    %20 = vector.multi_reduction <add>, %19, %cst [1] : vector<16x32xf32> to vector<16xf32>
    %21 = vector.shape_cast %20 : vector<16xf32> to vector<16x1xf32>
    %cst_26 = arith.constant 3.200000e+01 : f32
    %22 = vector.broadcast %cst_26 : f32 to vector<16x1xf32>
    %23 = arith.divf %21, %22 : vector<16x1xf32>
    %24 = vector.broadcast %23 : vector<16x1xf32> to vector<16x32xf32>
    %25 = arith.subf %19, %24 : vector<16x32xf32>
    %26 = arith.mulf %25, %25 : vector<16x32xf32>
    %cst_27 = arith.constant dense<0.000000e+00> : vector<16xf32>
    %27 = vector.multi_reduction <add>, %26, %cst_27 [1] : vector<16x32xf32> to vector<16xf32>
    %28 = vector.shape_cast %27 : vector<16xf32> to vector<16x1xf32>
    %cst_28 = arith.constant 3.200000e+01 : f32
    %29 = vector.broadcast %cst_28 : f32 to vector<16x1xf32>
    %30 = arith.divf %28, %29 : vector<16x1xf32>
    %31 = vector.broadcast %23 : vector<16x1xf32> to vector<16x32xf32>
    %32 = arith.subf %19, %31 : vector<16x32xf32>
    %cst_29 = arith.constant 9.99999996E-13 : f32
    %33 = vector.broadcast %cst_29 : f32 to vector<16x1xf32>
    %34 = arith.addf %30, %33 : vector<16x1xf32>
    %35 = math.rsqrt %34 : vector<16x1xf32>
    %36 = vector.broadcast %35 : vector<16x1xf32> to vector<16x32xf32>
    %37 = arith.mulf %32, %36 : vector<16x32xf32>
    %38 = vector.broadcast %6 : vector<1x32xf32> to vector<16x32xf32>
    %39 = arith.mulf %37, %38 : vector<16x32xf32>
    %40 = vector.broadcast %7 : vector<1x32xf32> to vector<16x32xf32>
    %41 = arith.addf %39, %40 : vector<16x32xf32>
    %42 = vector.extract_strided_slice %41 {offsets = [0, 0], sizes = [2, 32], strides = [1, 1]} : vector<16x32xf32> to vector<2x32xf32>
    %cst_30 = arith.constant dense<0.000000e+00> : vector<16x64xf32>
    %43 = tpu.matmul %41, %1, %cst_30 {dimension_numbers = #tpu.dot_dimension_numbers<[1], [0], [0], [1], [0, 0, 1, 1], [], []>} : vector<16x32xf32>, vector<32x64xf32>, vector<16x64xf32> -> vector<16x64xf32>
    %44 = vector.broadcast %16 : vector<1x64xf32> to vector<16x64xf32>
    %45 = arith.addf %43, %44 : vector<16x64xf32>
    %46 = vector.extract_strided_slice %45 {offsets = [0, 0], sizes = [16, 32], strides = [1, 1]} : vector<16x64xf32> to vector<16x32xf32>
    %47 = vector.extract_strided_slice %45 {offsets = [0, 32], sizes = [16, 32], strides = [1, 1]} : vector<16x64xf32> to vector<16x32xf32>
    %cst_31 = arith.constant dense<0.000000e+00> : vector<2x32xf32>
    %48 = tpu.matmul %42, %0, %cst_31 {dimension_numbers = #tpu.dot_dimension_numbers<[1], [0], [0], [1], [0, 0, 1, 1], [], []>} : vector<2x32xf32>, vector<32x32xf32>, vector<2x32xf32> -> vector<2x32xf32>
    %49 = vector.broadcast %15 : vector<1x32xf32> to vector<2x32xf32>
    %50 = arith.addf %48, %49 : vector<2x32xf32>
    %51 = tpu.iota {dimensions = array<i32: 0>} : vector<2x16xi32>
    %52 = tpu.iota {dimensions = array<i32: 1>} : vector<2x16xi32>
    %c2_i32 = arith.constant 2 : i32
    %c0_i32 = arith.constant 0 : i32
    %53 = arith.cmpi eq, %c2_i32, %c0_i32 : i32
    %c1_i32 = arith.constant 1 : i32
    %54 = arith.select %53, %c1_i32, %c2_i32 : i32
    %55 = vector.broadcast %54 : i32 to vector<2x16xi32>
    %56 = arith.remsi %52, %55 : vector<2x16xi32>
    %c0_i32_32 = arith.constant 0 : i32
    %57 = vector.broadcast %c0_i32_32 : i32 to vector<2x16xi32>
    %58 = arith.cmpi ne, %56, %57 : vector<2x16xi32>
    %c0_i32_33 = arith.constant 0 : i32
    %59 = vector.broadcast %c0_i32_33 : i32 to vector<2x16xi32>
    %60 = arith.cmpi slt, %56, %59 : vector<2x16xi32>
    %c0_i32_34 = arith.constant 0 : i32
    %61 = arith.cmpi slt, %54, %c0_i32_34 : i32
    %62 = vector.broadcast %61 : i1 to vector<2x16xi1>
    %63 = vector.broadcast %62 : vector<2x16xi1> to vector<2x16xi1>
    %64 = arith.xori %60, %63 : vector<2x16xi1>
    %65 = arith.andi %64, %58 : vector<2x16xi1>
    %66 = vector.broadcast %54 : i32 to vector<2x16xi32>
    %67 = arith.addi %56, %66 : vector<2x16xi32>
    %68 = arith.select %65, %67, %56 : vector<2x16xi1>, vector<2x16xi32>
    %69 = arith.cmpi eq, %68, %51 : vector<2x16xi32>
    %c0_35 = arith.constant 0 : index
    %c0_36 = arith.constant 0 : index
    %70 = vector.load %arg1[%c0_35, %c0_36] : memref<1x16xf32, #tpu.memory_space<vmem>>, vector<1x16xf32>
    %71 = vector.shape_cast %70 : vector<1x16xf32> to vector<1x16xf32>
    %72 = vector.broadcast %71 : vector<1x16xf32> to vector<2x16xf32>
    %cst_37 = arith.constant 0.000000e+00 : f32
    %cst_38 = arith.constant -1.000000e+04 : f32
    %73 = vector.broadcast %cst_37 : f32 to vector<2x16xf32>
    %74 = vector.broadcast %cst_38 : f32 to vector<2x16xf32>
    %75 = arith.select %69, %73, %74 : vector<2x16xi1>, vector<2x16xf32>
    %cst_39 = arith.constant 1.000000e+00 : f32
    %76 = vector.broadcast %cst_39 : f32 to vector<2x16xf32>
    %77 = arith.subf %72, %76 : vector<2x16xf32>
    %cst_40 = arith.constant 1.000000e+04 : f32
    %78 = vector.broadcast %cst_40 : f32 to vector<2x16xf32>
    %79 = arith.mulf %77, %78 : vector<2x16xf32>
    %80 = arith.addf %75, %79 : vector<2x16xf32>
    %81 = tpu.iota {dimensions = array<i32: 1>} : vector<1x32xi32>
    %cst_41 = arith.constant 0.000000e+00 : f32
    %82 = vector.broadcast %cst_41 : f32 to vector<2x32xf32>
    %c0_i32_42 = arith.constant 0 : i32
    %83 = vector.broadcast %c0_i32_42 : i32 to vector<1x32xi32>
    %84 = arith.cmpi sge, %81, %83 : vector<1x32xi32>
    %c16_i32 = arith.constant 16 : i32
    %85 = vector.broadcast %c16_i32 : i32 to vector<1x32xi32>
    %86 = arith.cmpi slt, %81, %85 : vector<1x32xi32>
    %87 = arith.andi %84, %86 : vector<1x32xi1>
    %cst_43 = arith.constant 1.000000e+00 : f32
    %cst_44 = arith.constant 0.000000e+00 : f32
    %88 = vector.broadcast %cst_43 : f32 to vector<1x32xf32>
    %89 = vector.broadcast %cst_44 : f32 to vector<1x32xf32>
    %90 = arith.select %87, %88, %89 : vector<1x32xi1>, vector<1x32xf32>
    %91 = vector.broadcast %90 : vector<1x32xf32> to vector<2x32xf32>
    %92 = arith.mulf %50, %91 : vector<2x32xf32>
    %cst_45 = arith.constant dense<0.000000e+00> : vector<2x16xf32>
    %93 = tpu.matmul %92, %46, %cst_45 {dimension_numbers = #tpu.dot_dimension_numbers<[1], [1], [0], [0], [0, 0, 1, 0], [], []>} : vector<2x32xf32>, vector<16x32xf32>, vector<2x16xf32> -> vector<2x16xf32>
    %cst_46 = arith.constant 2.500000e-01 : f32
    %94 = vector.broadcast %cst_46 : f32 to vector<2x16xf32>
    %95 = arith.mulf %93, %94 : vector<2x16xf32>
    %96 = arith.addf %95, %80 : vector<2x16xf32>
    %cst_47 = arith.constant dense<0xFF800000> : vector<2xf32>
    %97 = vector.multi_reduction <maximumf>, %96, %cst_47 [1] : vector<2x16xf32> to vector<2xf32>
    %98 = vector.shape_cast %97 : vector<2xf32> to vector<2x1xf32>
    %99 = vector.broadcast %98 : vector<2x1xf32> to vector<2x16xf32>
    %100 = arith.subf %96, %99 : vector<2x16xf32>
    %101 = math.exp %100 : vector<2x16xf32>
    %cst_48 = arith.constant dense<0.000000e+00> : vector<2xf32>
    %102 = vector.multi_reduction <add>, %101, %cst_48 [1] : vector<2x16xf32> to vector<2xf32>
    %103 = vector.shape_cast %102 : vector<2xf32> to vector<2x1xf32>
    %104 = tpu.reciprocal %103 : vector<2x1xf32> -> vector<2x1xf32>
    %105 = vector.broadcast %104 : vector<2x1xf32> to vector<2x16xf32>
    %106 = arith.mulf %101, %105 : vector<2x16xf32>
    %107 = vector.broadcast %90 : vector<1x32xf32> to vector<16x32xf32>
    %108 = arith.mulf %47, %107 : vector<16x32xf32>
    %cst_49 = arith.constant dense<0.000000e+00> : vector<2x32xf32>
    %109 = tpu.matmul %106, %108, %cst_49 {dimension_numbers = #tpu.dot_dimension_numbers<[1], [0], [0], [1], [0, 0, 1, 1], [], []>} : vector<2x16xf32>, vector<16x32xf32>, vector<2x32xf32> -> vector<2x32xf32>
    %110 = arith.addf %82, %109 : vector<2x32xf32>
    %c16_i32_50 = arith.constant 16 : i32
    %111 = vector.broadcast %c16_i32_50 : i32 to vector<1x32xi32>
    %112 = arith.cmpi sge, %81, %111 : vector<1x32xi32>
    %c32_i32 = arith.constant 32 : i32
    %113 = vector.broadcast %c32_i32 : i32 to vector<1x32xi32>
    %114 = arith.cmpi slt, %81, %113 : vector<1x32xi32>
    %115 = arith.andi %112, %114 : vector<1x32xi1>
    %cst_51 = arith.constant 1.000000e+00 : f32
    %cst_52 = arith.constant 0.000000e+00 : f32
    %116 = vector.broadcast %cst_51 : f32 to vector<1x32xf32>
    %117 = vector.broadcast %cst_52 : f32 to vector<1x32xf32>
    %118 = arith.select %115, %116, %117 : vector<1x32xi1>, vector<1x32xf32>
    %119 = vector.broadcast %118 : vector<1x32xf32> to vector<2x32xf32>
    %120 = arith.mulf %50, %119 : vector<2x32xf32>
    %cst_53 = arith.constant dense<0.000000e+00> : vector<2x16xf32>
    %121 = tpu.matmul %120, %46, %cst_53 {dimension_numbers = #tpu.dot_dimension_numbers<[1], [1], [0], [0], [0, 0, 1, 0], [], []>} : vector<2x32xf32>, vector<16x32xf32>, vector<2x16xf32> -> vector<2x16xf32>
    %cst_54 = arith.constant 2.500000e-01 : f32
    %122 = vector.broadcast %cst_54 : f32 to vector<2x16xf32>
    %123 = arith.mulf %121, %122 : vector<2x16xf32>
    %124 = arith.addf %123, %80 : vector<2x16xf32>
    %cst_55 = arith.constant dense<0xFF800000> : vector<2xf32>
    %125 = vector.multi_reduction <maximumf>, %124, %cst_55 [1] : vector<2x16xf32> to vector<2xf32>
    %126 = vector.shape_cast %125 : vector<2xf32> to vector<2x1xf32>
    %127 = vector.broadcast %126 : vector<2x1xf32> to vector<2x16xf32>
    %128 = arith.subf %124, %127 : vector<2x16xf32>
    %129 = math.exp %128 : vector<2x16xf32>
    %cst_56 = arith.constant dense<0.000000e+00> : vector<2xf32>
    %130 = vector.multi_reduction <add>, %129, %cst_56 [1] : vector<2x16xf32> to vector<2xf32>
    %131 = vector.shape_cast %130 : vector<2xf32> to vector<2x1xf32>
    %132 = tpu.reciprocal %131 : vector<2x1xf32> -> vector<2x1xf32>
    %133 = vector.broadcast %132 : vector<2x1xf32> to vector<2x16xf32>
    %134 = arith.mulf %129, %133 : vector<2x16xf32>
    %135 = vector.broadcast %118 : vector<1x32xf32> to vector<16x32xf32>
    %136 = arith.mulf %47, %135 : vector<16x32xf32>
    %cst_57 = arith.constant dense<0.000000e+00> : vector<2x32xf32>
    %137 = tpu.matmul %134, %136, %cst_57 {dimension_numbers = #tpu.dot_dimension_numbers<[1], [0], [0], [1], [0, 0, 1, 1], [], []>} : vector<2x16xf32>, vector<16x32xf32>, vector<2x32xf32> -> vector<2x32xf32>
    %138 = arith.addf %110, %137 : vector<2x32xf32>
    %cst_58 = arith.constant dense<0.000000e+00> : vector<2x32xf32>
    %139 = tpu.matmul %138, %2, %cst_58 {dimension_numbers = #tpu.dot_dimension_numbers<[1], [0], [0], [1], [0, 0, 1, 1], [], []>} : vector<2x32xf32>, vector<32x32xf32>, vector<2x32xf32> -> vector<2x32xf32>
    %140 = vector.broadcast %12 : vector<1x32xf32> to vector<2x32xf32>
    %141 = arith.addf %139, %140 : vector<2x32xf32>
    %142 = arith.addf %42, %141 : vector<2x32xf32>
    %cst_59 = arith.constant dense<0.000000e+00> : vector<2xf32>
    %143 = vector.multi_reduction <add>, %142, %cst_59 [1] : vector<2x32xf32> to vector<2xf32>
    %144 = vector.shape_cast %143 : vector<2xf32> to vector<2x1xf32>
    %cst_60 = arith.constant 3.200000e+01 : f32
    %145 = vector.broadcast %cst_60 : f32 to vector<2x1xf32>
    %146 = arith.divf %144, %145 : vector<2x1xf32>
    %147 = vector.broadcast %146 : vector<2x1xf32> to vector<2x32xf32>
    %148 = arith.subf %142, %147 : vector<2x32xf32>
    %149 = arith.mulf %148, %148 : vector<2x32xf32>
    %cst_61 = arith.constant dense<0.000000e+00> : vector<2xf32>
    %150 = vector.multi_reduction <add>, %149, %cst_61 [1] : vector<2x32xf32> to vector<2xf32>
    %151 = vector.shape_cast %150 : vector<2xf32> to vector<2x1xf32>
    %cst_62 = arith.constant 3.200000e+01 : f32
    %152 = vector.broadcast %cst_62 : f32 to vector<2x1xf32>
    %153 = arith.divf %151, %152 : vector<2x1xf32>
    %154 = vector.broadcast %146 : vector<2x1xf32> to vector<2x32xf32>
    %155 = arith.subf %142, %154 : vector<2x32xf32>
    %cst_63 = arith.constant 9.99999996E-13 : f32
    %156 = vector.broadcast %cst_63 : f32 to vector<2x1xf32>
    %157 = arith.addf %153, %156 : vector<2x1xf32>
    %158 = math.rsqrt %157 : vector<2x1xf32>
    %159 = vector.broadcast %158 : vector<2x1xf32> to vector<2x32xf32>
    %160 = arith.mulf %155, %159 : vector<2x32xf32>
    %161 = vector.broadcast %8 : vector<1x32xf32> to vector<2x32xf32>
    %162 = arith.mulf %160, %161 : vector<2x32xf32>
    %163 = vector.broadcast %9 : vector<1x32xf32> to vector<2x32xf32>
    %164 = arith.addf %162, %163 : vector<2x32xf32>
    %cst_64 = arith.constant dense<0.000000e+00> : vector<2x64xf32>
    %165 = tpu.matmul %164, %3, %cst_64 {dimension_numbers = #tpu.dot_dimension_numbers<[1], [0], [0], [1], [0, 0, 1, 1], [], []>} : vector<2x32xf32>, vector<32x64xf32>, vector<2x64xf32> -> vector<2x64xf32>
    %166 = vector.broadcast %17 : vector<1x64xf32> to vector<2x64xf32>
    %167 = arith.addf %165, %166 : vector<2x64xf32>
    %168 = arith.mulf %167, %167 : vector<2x64xf32>
    %169 = arith.mulf %167, %168 : vector<2x64xf32>
    %cst_65 = arith.constant 4.471500e-02 : f32
    %170 = vector.broadcast %cst_65 : f32 to vector<2x64xf32>
    %171 = arith.mulf %170, %169 : vector<2x64xf32>
    %172 = arith.addf %167, %171 : vector<2x64xf32>
    %cst_66 = arith.constant 0.797884583 : f32
    %173 = vector.broadcast %cst_66 : f32 to vector<2x64xf32>
    %174 = arith.mulf %173, %172 : vector<2x64xf32>
    %175 = math.tanh %174 : vector<2x64xf32>
    %cst_67 = arith.constant 1.000000e+00 : f32
    %176 = vector.broadcast %cst_67 : f32 to vector<2x64xf32>
    %177 = arith.addf %176, %175 : vector<2x64xf32>
    %cst_68 = arith.constant 5.000000e-01 : f32
    %178 = vector.broadcast %cst_68 : f32 to vector<2x64xf32>
    %179 = arith.mulf %178, %177 : vector<2x64xf32>
    %180 = arith.mulf %167, %179 : vector<2x64xf32>
    %c0_69 = arith.constant 0 : index
    %c0_70 = arith.constant 0 : index
    %181 = vector.load %arg4[%c0_69, %c0_70] : memref<64x32xf32, #tpu.memory_space<vmem>>, vector<64x32xf32>
    %cst_71 = arith.constant dense<0.000000e+00> : vector<2x32xf32>
    %182 = tpu.matmul %180, %181, %cst_71 {dimension_numbers = #tpu.dot_dimension_numbers<[1], [0], [0], [1], [0, 0, 1, 1], [], []>} : vector<2x64xf32>, vector<64x32xf32>, vector<2x32xf32> -> vector<2x32xf32>
    %183 = vector.broadcast %13 : vector<1x32xf32> to vector<2x32xf32>
    %184 = arith.addf %182, %183 : vector<2x32xf32>
    %185 = arith.addf %164, %184 : vector<2x32xf32>
    %cst_72 = arith.constant dense<0.000000e+00> : vector<2xf32>
    %186 = vector.multi_reduction <add>, %185, %cst_72 [1] : vector<2x32xf32> to vector<2xf32>
    %187 = vector.shape_cast %186 : vector<2xf32> to vector<2x1xf32>
    %cst_73 = arith.constant 3.200000e+01 : f32
    %188 = vector.broadcast %cst_73 : f32 to vector<2x1xf32>
    %189 = arith.divf %187, %188 : vector<2x1xf32>
    %190 = vector.broadcast %189 : vector<2x1xf32> to vector<2x32xf32>
    %191 = arith.subf %185, %190 : vector<2x32xf32>
    %192 = arith.mulf %191, %191 : vector<2x32xf32>
    %cst_74 = arith.constant dense<0.000000e+00> : vector<2xf32>
    %193 = vector.multi_reduction <add>, %192, %cst_74 [1] : vector<2x32xf32> to vector<2xf32>
    %194 = vector.shape_cast %193 : vector<2xf32> to vector<2x1xf32>
    %cst_75 = arith.constant 3.200000e+01 : f32
    %195 = vector.broadcast %cst_75 : f32 to vector<2x1xf32>
    %196 = arith.divf %194, %195 : vector<2x1xf32>
    %197 = vector.broadcast %189 : vector<2x1xf32> to vector<2x32xf32>
    %198 = arith.subf %185, %197 : vector<2x32xf32>
    %cst_76 = arith.constant 9.99999996E-13 : f32
    %199 = vector.broadcast %cst_76 : f32 to vector<2x1xf32>
    %200 = arith.addf %196, %199 : vector<2x1xf32>
    %201 = math.rsqrt %200 : vector<2x1xf32>
    %202 = vector.broadcast %201 : vector<2x1xf32> to vector<2x32xf32>
    %203 = arith.mulf %198, %202 : vector<2x32xf32>
    %204 = vector.broadcast %10 : vector<1x32xf32> to vector<2x32xf32>
    %205 = arith.mulf %203, %204 : vector<2x32xf32>
    %206 = vector.broadcast %11 : vector<1x32xf32> to vector<2x32xf32>
    %207 = arith.addf %205, %206 : vector<2x32xf32>
    %cst_77 = arith.constant dense<0.000000e+00> : vector<2x32xf32>
    %208 = tpu.matmul %207, %4, %cst_77 {dimension_numbers = #tpu.dot_dimension_numbers<[1], [0], [0], [1], [0, 0, 1, 1], [], []>} : vector<2x32xf32>, vector<32x32xf32>, vector<2x32xf32> -> vector<2x32xf32>
    %209 = vector.broadcast %14 : vector<1x32xf32> to vector<2x32xf32>
    %210 = arith.addf %208, %209 : vector<2x32xf32>
    %211 = math.tanh %210 : vector<2x32xf32>
    %cst_78 = arith.constant dense<0.000000e+00> : vector<2x16xf32>
    %212 = tpu.matmul %211, %5, %cst_78 {dimension_numbers = #tpu.dot_dimension_numbers<[1], [0], [0], [1], [0, 0, 1, 1], [], []>} : vector<2x32xf32>, vector<32x16xf32>, vector<2x16xf32> -> vector<2x16xf32>
    %213 = vector.broadcast %18 : vector<1x16xf32> to vector<2x16xf32>
    %214 = arith.addf %212, %213 : vector<2x16xf32>
    %cst_79 = arith.constant dense<0xFF800000> : vector<2xf32>
    %215 = vector.multi_reduction <maximumf>, %214, %cst_79 [1] : vector<2x16xf32> to vector<2xf32>
    %216 = vector.shape_cast %215 : vector<2xf32> to vector<2x1xf32>
    %217 = vector.broadcast %216 : vector<2x1xf32> to vector<2x16xf32>
    %218 = arith.subf %214, %217 : vector<2x16xf32>
    %219 = math.exp %218 : vector<2x16xf32>
    %cst_80 = arith.constant dense<0.000000e+00> : vector<2xf32>
    %220 = vector.multi_reduction <add>, %219, %cst_80 [1] : vector<2x16xf32> to vector<2xf32>
    %221 = vector.shape_cast %220 : vector<2xf32> to vector<2x1xf32>
    %222 = tpu.reciprocal %221 : vector<2x1xf32> -> vector<2x1xf32>
    %223 = tpu.iota {dimensions = array<i32: 1>} : vector<2x16xi32>
    %224 = vector.broadcast %216 : vector<2x1xf32> to vector<2x16xf32>
    %225 = arith.cmpf oeq, %214, %224 : vector<2x16xf32>
    %c16_i32_81 = arith.constant 16 : i32
    %226 = vector.broadcast %c16_i32_81 : i32 to vector<2x16xi32>
    %227 = arith.select %225, %223, %226 : vector<2x16xi1>, vector<2x16xi32>
    %cst_82 = arith.constant dense<2147483647> : vector<2xi32>
    %228 = vector.multi_reduction <minsi>, %227, %cst_82 [1] : vector<2x16xi32> to vector<2xi32>
    %229 = vector.shape_cast %228 : vector<2xi32> to vector<2x1xi32>
    %230 = math.log %221 : vector<2x1xf32>
    %231 = arith.addf %216, %230 : vector<2x1xf32>
    %c0_83 = arith.constant 0 : index
    %c0_84 = arith.constant 0 : index
    %232 = vector.load %arg2[%c0_83, %c0_84] : memref<2x16xf32, #tpu.memory_space<vmem>>, vector<2x16xf32>
    %233 = arith.mulf %232, %214 : vector<2x16xf32>
    %cst_85 = arith.constant dense<0.000000e+00> : vector<2xf32>
    %234 = vector.multi_reduction <add>, %233, %cst_85 [1] : vector<2x16xf32> to vector<2xf32>
    %235 = vector.shape_cast %234 : vector<2xf32> to vector<2x1xf32>
    %236 = arith.subf %231, %235 : vector<2x1xf32>
    %237 = vector.shape_cast %236 : vector<2x1xf32> to vector<1x2x1xf32>
    %cst_86 = arith.constant dense<0.000000e+00> : vector<1xf32>
    %238 = vector.multi_reduction <add>, %237, %cst_86 [1, 2] : vector<1x2x1xf32> to vector<1xf32>
    %239 = vector.shape_cast %238 : vector<1xf32> to vector<1x1x1xf32>
    %240 = vector.extract %239[0, 0, 0] : f32 from vector<1x1x1xf32>
    %241 = vector.broadcast %240 : f32 to vector<1x1xf32>
    %cst_87 = arith.constant 2.000000e+00 : f32
    %242 = vector.broadcast %cst_87 : f32 to vector<1x1xf32>
    %243 = arith.divf %241, %242 : vector<1x1xf32>
    %244 = arith.sitofp %229 : vector<2x1xi32> to vector<2x1xf32>
    %245 = vector.shape_cast %243 : vector<1x1xf32> to vector<1x1xf32>
    %246 = vector.broadcast %245 : vector<1x1xf32> to vector<2x1xf32>
    %247 = tpu.concatenate %222, %244, %246 in 1 : vector<2x1xf32>, vector<2x1xf32>, vector<2x1xf32> -> vector<2x3xf32>
    %cst_88 = arith.constant 0.000000e+00 : f32
    %248 = vector.broadcast %cst_88 : f32 to vector<8x128xf32>
    %c0_89 = arith.constant 0 : index
    %c0_90 = arith.constant 0 : index
    %249 = vector.load %arg7[%c0_89, %c0_90] : memref<8x128xf32, #tpu.memory_space<vmem>>, vector<8x128xf32>
    tpu.vector_store %arg7[%c0_89, %c0_90], %248 {strides = array<i32>} : memref<8x128xf32, #tpu.memory_space<vmem>>, vector<8x128xf32>,
    %c0_91 = arith.constant 0 : index
    %c0_92 = arith.constant 0 : index
    %250 = vector.load %arg7[%c0_91, %c0_92] : memref<8x128xf32, #tpu.memory_space<vmem>>, vector<2x3xf32>
    tpu.vector_store %arg7[%c0_91, %c0_92], %247 {strides = array<i32>} : memref<8x128xf32, #tpu.memory_space<vmem>>, vector<2x3xf32>,
    return
  }
}

</mosaic_0001>

<llo_original>
// kernel: tpu_custom_call.1
$region0: #{tpu_custom_call.1}
  #allocation0 [shape = 'u32[]', space=smem, size = 0x4, offset = 0x4, fixed_abs, tag = 'smem constant byte address 0x4 - core index']
  #allocation1 [shape = 'u32[144,128]{1,0:T(1,128)}', space=vmem, size = 0x12000, scoped, tag = 'internal scratch']
  %s0 = inlined_call_operand.vmem [shape: f32[16,32], index: 0, kind: input, shape index: {}]
  %s1 = inlined_call_operand.vmem [shape: f32[1,16], index: 1, kind: input, shape index: {}]
  %s2 = inlined_call_operand.vmem [shape: f32[2,16], index: 2, kind: input, shape index: {}]
  %s3 = inlined_call_operand.vmem [shape: f32[32,240], index: 3, kind: input, shape index: {}]
  %s4 = inlined_call_operand.vmem [shape: f32[64,32], index: 4, kind: input, shape index: {}]
  %s5 = inlined_call_operand.vmem [shape: f32[9,32], index: 5, kind: input, shape index: {}]
  %s6 = inlined_call_operand.vmem [shape: f32[3,96], index: 6, kind: input, shape index: {}]
  %s7 = inlined_call_operand.hbm [shape: f32[8,128], index: 7, kind: output, shape index: {}]
  %s8 = sld [smem:[#allocation0]]
  $region38: #{tpu_custom_call.1} parent=0
    _
  %s10 = ssub.s32 1, %s8
  %s11 = scalar_select 0, %s10, %s8
  $region1: #{tpu_custom_call.1} parent=0
    #allocation2 [shape = 'u8[4096]{0}', space=vmem, size = 0x1000, scoped, tag = 'output window, operand 0, single buffered']
    #allocation3 [shape = 's32[1]{0}', space=sflag, size = 0x4, scoped, tag = 'scoped memory for tpu_custom_call.1']
    %12 = vsyncpa [#allocation3], 0
    // Predicated region
    $region2: #{tpu_custom_call.1} parent=1 // pred_check
      _
    $region3: #{tpu_custom_call.1} parent=1 // pred_check_branch
      %14 = sbr.rel (0) target = $region5
    $region4: #{tpu_custom_call.1} parent=1 // pred_region
      _
    $region5: #{tpu_custom_call.1} parent=1 // pred_fallthru
      _
    // Predicated region
    $region6: #{tpu_custom_call.1} parent=1 // pred_check
      _
    $region7: #{tpu_custom_call.1} parent=1 // pred_check_branch
      %16 = sbr.rel (0) target = $region9
    $region8: #{tpu_custom_call.1} parent=1 // pred_region
      _
    $region9: #{tpu_custom_call.1} parent=1 // pred_fallthru
      _
    // Predicated region
    $region10: #{tpu_custom_call.1} parent=1 // pred_check
      _
    $region11: #{tpu_custom_call.1} parent=1 // pred_check_branch
      %18 = sbr.rel (0) target = $region13
    $region12: #{tpu_custom_call.1} parent=1 // pred_region
      _
    $region13: #{tpu_custom_call.1} parent=1 // pred_fallthru
      _
    // Predicated region
    $region14: #{tpu_custom_call.1} parent=1 // pred_check
      _
    $region15: #{tpu_custom_call.1} parent=1 // pred_check_branch
      %20 = sbr.rel (0) target = $region17
    $region16: #{tpu_custom_call.1} parent=1 // pred_region
      _
    $region17: #{tpu_custom_call.1} parent=1 // pred_fallthru
      _
    // Predicated region
    $region18: #{tpu_custom_call.1} parent=1 // pred_check
      _
    $region19: #{tpu_custom_call.1} parent=1 // pred_check_branch
      %22 = sbr.rel (0) target = $region21
    $region20: #{tpu_custom_call.1} parent=1 // pred_region
      _
    $region21: #{tpu_custom_call.1} parent=1 // pred_fallthru
      _
    // Predicated region
    $region22: #{tpu_custom_call.1} parent=1 // pred_check
      _
    $region23: #{tpu_custom_call.1} parent=1 // pred_check_branch
      %24 = sbr.rel (0) target = $region25
    $region24: #{tpu_custom_call.1} parent=1 // pred_region
      _
    $region25: #{tpu_custom_call.1} parent=1 // pred_fallthru
      _
    // Predicated region
    $region26: #{tpu_custom_call.1} parent=1 // pred_check
      _
    $region27: #{tpu_custom_call.1} parent=1 // pred_check_branch
      %26 = sbr.rel (0) target = $region29
    $region28: #{tpu_custom_call.1} parent=1 // pred_region
      _
    $region29: #{tpu_custom_call.1} parent=1 // pred_fallthru
      _
    %v27 = vld [vmem:[%s3] sm:$0xff]
    %v28 = vld [vmem:[%s3 + $0x10] sm:$0xff]
    %v29 = vld [vmem:[%s3 + $0x20] sm:$0xff]
    %v30 = vld [vmem:[%s3 + $0x30] sm:$0xff]
    %v31 = vld [vmem:[%s3 + $0x8] sm:$0xff]
    %v32 = vld [vmem:[%s3 + $0x18] sm:$0xff]
    %v33 = vld [vmem:[%s3 + $0x28] sm:$0xff]
    %v34 = vld [vmem:[%s3 + $0x38] sm:$0xff]
    %v35 = vld [vmem:[%s5] sm:$0x1]
    %v36 = vld [vmem:[%s5 + $0x1] sm:$0x1]
    %v37 = vld [vmem:[%s5 + $0x2] sm:$0x1]
    %v38 = vld [vmem:[%s5 + $0x3] sm:$0x1]
    %v39 = vld [vmem:[%s5 + $0x4] sm:$0x1]
    %v40 = vld [vmem:[%s5 + $0x5] sm:$0x1]
    %v41 = vld [vmem:[%s5 + $0x6] sm:$0x1]
    %v42 = vld [vmem:[%s5 + $0x7] sm:$0x1]
    %v43 = vld [vmem:[%s5 + $0x8] sm:$0x1]
    %v44 = vld [vmem:[%s6] sm:$0x1]
    %v45 = vld [vmem:[%s6 + $0x1] sm:$0x1]
    %v46 = vld [vmem:[%s6 + $0x2] sm:$0x1]
    %v47 = vld [vmem:[%s0] sm:$0xff]
    %v48 = vld [vmem:[%s0 + $0x8] sm:$0xff]
    %vm49 = vcmask 261120
    %v50 = vsel %vm49, %v47, 0.0
    %51 = vadd.xlane.f32.xlu0 %v50
    %v52 = vpop.xlane.xlu0 %51
    %v53 = vsel %vm49, %v48, 0.0
    %54 = vadd.xlane.f32.xlu0 %v53
    %v55 = vpop.xlane.xlu0 %54
    %v56 = vrcp.pop 32.0
    %v57 = vmul.f32 %v52, %v56
    %v58 = vmul.f32 %v55, %v56
    %v59 = vsub.f32 %v47, %v57
    %v60 = vsub.f32 %v48, %v58
    %v61 = vmul.f32 %v59, %v59
    %v62 = vmul.f32 %v60, %v60
    %v63 = vsel %vm49, %v61, 0.0
    %64 = vadd.xlane.f32.xlu0 %v63
    %v65 = vpop.xlane.xlu0 %64
    %v66 = vsel %vm49, %v62, 0.0
    %67 = vadd.xlane.f32.xlu0 %v66
    %v68 = vpop.xlane.xlu0 %67
    %v69 = vmul.f32 %v65, %v56
    %v70 = vmul.f32 %v68, %v56
    %v71 = vadd.f32 %v69, 1e-12
    %v72 = vadd.f32 %v70, 1e-12
    %v73 = vrsqrt.pop %v71
    %v74 = vrsqrt.pop %v72
    %v75 = vmul.f32 %v59, %v73
    %v76 = vmul.f32 %v60, %v74
    %v77 = vlaneseq
    %v78 = vshrl.u32 %v77, 7
    %v79 = vsub.s32 0, %v78
    %v80 = vrot.slane %v35, %v79
    %v81 = vmul.f32 %v75, %v80
    %v82 = vmul.f32 %v76, %v80
    %v83 = vlaneseq
    %v84 = vshrl.u32 %v83, 7
    %v85 = vsub.s32 0, %v84
    %v86 = vrot.slane %v36, %v85
    %v87 = vadd.f32 %v81, %v86
    %v88 = vadd.f32 %v82, %v86
    %v89 = vlaneseq
    %v90 = vshrl.u32 %v89, 7
    %v91 = vsub.s32 0, %v90
    %v92 = vrot.slane %v44, %v91
    %97 = vrot.lane.b32.xlu0 %v27, 96
    %v98 = vpop.permute.xlu0 %97
    %99 = vrot.lane.b32.xlu0 %v28, 96
    %v100 = vpop.permute.xlu0 %99
    %101 = vrot.lane.b32.xlu0 %v29, 96
    %v102 = vpop.permute.xlu0 %101
    %103 = vrot.lane.b32.xlu0 %v30, 96
    %v104 = vpop.permute.xlu0 %103
    %110 = vrot.lane.b32.xlu0 %v92, 96
    %v111 = vpop.permute.xlu0 %110
    %v114 = vsel %vm49, %v87, 0
    %v117 = vsel %vm49, %v88, 0
    %119 = vmatprep.subr.mxu0 0.0
    %120 = vmatpush1.msra.mxu0 %v98
    %121 = vmatprep.subr.mxu0 0.0
    %122 = vmatpush1.msra.mxu0 %v100
    %123 = vmatprep.subr.mxu0 0.0
    %124 = vmatpush1.msra.mxu0 %v102
    %125 = vmatprep.subr.mxu0 0.0
    %126 = vmatpush1.msra.mxu0 %v104
    %127 = vmatprep.subr.mxu0 0.0
    %128 = vmatpush1.msra.mxu0 0.0
    %129 = vmatprep.subr.mxu0 0.0
    %130 = vmatpush1.msra.mxu0 0.0
    %131 = vmatprep.subr.mxu0 0.0
    %132 = vmatpush1.msra.mxu0 0.0
    %133 = vmatprep.subr.mxu0 0.0
    %134 = vmatpush1.msra.mxu0 0.0
    %135 = vmatprep.subr.mxu0 0.0
    %136 = vmatpush1.msra.mxu0 0.0
    %137 = vmatprep.subr.mxu0 0.0
    %138 = vmatpush1.msra.mxu0 0.0
    %139 = vmatprep.subr.mxu0 0.0
    %140 = vmatpush1.msra.mxu0 0.0
    %141 = vmatprep.subr.mxu0 0.0
    %142 = vmatpush1.msra.mxu0 0.0
    %143 = vmatprep.subr.mxu0 0.0
    %144 = vmatpush1.msra.mxu0 0.0
    %145 = vmatprep.subr.mxu0 0.0
    %146 = vmatpush1.msra.mxu0 0.0
    %147 = vmatprep.subr.mxu0 0.0
    %148 = vmatpush1.msra.mxu0 0.0
    %149 = vmatprep.subr.mxu0 0.0
    %150 = vmatpush1.msra.mxu0 0.0
    %151 = vmatprep.subr.mxu0 0.0
    %152 = vmatpush1.msra.mxu0 0.0
    %153 = vmatprep.subr.mxu0 0.0
    %154 = vmatpush1.msra.mxu0 0.0
    %155 = vmatprep.subr.mxu0 0.0
    %156 = vmatpush1.msra.mxu0 0.0
    %157 = vmatprep.subr.mxu0 0.0
    %158 = vmatpush1.msra.mxu0 0.0
    %159 = vmatprep.subr.mxu0 0.0
    %160 = vmatpush1.msra.mxu0 0.0
    %161 = vmatprep.subr.mxu0 0.0
    %162 = vmatpush1.msra.mxu0 0.0
    %163 = vmatprep.subr.mxu0 0.0
    %164 = vmatpush1.msra.mxu0 0.0
    %165 = vmatprep.subr.mxu0 0.0
    %166 = vmatpush1.msra.mxu0 0.0
    %167 = vmatprep.subr.mxu0 0.0
    %168 = vmatpush1.msra.mxu0 0.0
    %169 = vmatprep.subr.mxu0 0.0
    %170 = vmatpush1.msra.mxu0 0.0
    %171 = vmatprep.subr.mxu0 0.0
    %172 = vmatpush1.msra.mxu0 0.0
    %173 = vmatprep.subr.mxu0 0.0
    %174 = vmatpush1.msra.mxu0 0.0
    %175 = vmatprep.subr.mxu0 0.0
    %176 = vmatpush1.msra.mxu0 0.0
    %177 = vmatprep.subr.mxu0 0.0
    %178 = vmatpush1.msra.mxu0 0.0
    %179 = vmatprep.subr.mxu0 0.0
    %180 = vmatpush1.msra.mxu0 0.0
    %181 = vmatprep.subr.mxu0 0.0
    %182 = vmatpush1.msra.mxu0 0.0
    %183 = vmatprep.mubr.f32.mxu0 0.0
    %184 = vmatmul.mubr.f32.gmra.mrb[0].mxu0 %v114
    %v185 = vpop.f32.mrb[0].mxu0
    %v186 = vadd.f32 %v111, %v185
    %v187 = vpop.f32.mrb[0].mxu0
    %188 = vmatprep.mubr.f32.mxu0 0.0
    %189 = vmatmul.mubr.f32.gmra.mrb[0].mxu0 %v117
    %v190 = vpop.f32.mrb[0].mxu0
    %v191 = vadd.f32 %v111, %v190
    %v192 = vpop.f32.mrb[0].mxu0
    %193 = vdwg.mxu0
    %194 = vmatprep.subr.mxu0 0.0
    %195 = vmatpush1.msra.mxu0 %v27
    %196 = vmatprep.subr.mxu0 0.0
    %197 = vmatpush1.msra.mxu0 %v28
    %198 = vmatprep.subr.mxu0 0.0
    %199 = vmatpush1.msra.mxu0 %v29
    %200 = vmatprep.subr.mxu0 0.0
    %201 = vmatpush1.msra.mxu0 %v30
    %202 = vmatprep.subr.mxu0 0.0
    %203 = vmatpush1.msra.mxu0 0.0
    %204 = vmatprep.subr.mxu0 0.0
    %205 = vmatpush1.msra.mxu0 0.0
    %206 = vmatprep.subr.mxu0 0.0
    %207 = vmatpush1.msra.mxu0 0.0
    %208 = vmatprep.subr.mxu0 0.0
    %209 = vmatpush1.msra.mxu0 0.0
    %210 = vmatprep.subr.mxu0 0.0
    %211 = vmatpush1.msra.mxu0 0.0
    %212 = vmatprep.subr.mxu0 0.0
    %213 = vmatpush1.msra.mxu0 0.0
    %214 = vmatprep.subr.mxu0 0.0
    %215 = vmatpush1.msra.mxu0 0.0
    %216 = vmatprep.subr.mxu0 0.0
    %217 = vmatpush1.msra.mxu0 0.0
    %218 = vmatprep.subr.mxu0 0.0
    %219 = vmatpush1.msra.mxu0 0.0
    %220 = vmatprep.subr.mxu0 0.0
    %221 = vmatpush1.msra.mxu0 0.0
    %222 = vmatprep.subr.mxu0 0.0
    %223 = vmatpush1.msra.mxu0 0.0
    %224 = vmatprep.subr.mxu0 0.0
    %225 = vmatpush1.msra.mxu0 0.0
    %226 = vmatprep.subr.mxu0 0.0
    %227 = vmatpush1.msra.mxu0 0.0
    %228 = vmatprep.subr.mxu0 0.0
    %229 = vmatpush1.msra.mxu0 0.0
    %230 = vmatprep.subr.mxu0 0.0
    %231 = vmatpush1.msra.mxu0 0.0
    %232 = vmatprep.subr.mxu0 0.0
    %233 = vmatpush1.msra.mxu0 0.0
    %234 = vmatprep.subr.mxu0 0.0
    %235 = vmatpush1.msra.mxu0 0.0
    %236 = vmatprep.subr.mxu0 0.0
    %237 = vmatpush1.msra.mxu0 0.0
    %238 = vmatprep.subr.mxu0 0.0
    %239 = vmatpush1.msra.mxu0 0.0
    %240 = vmatprep.subr.mxu0 0.0
    %241 = vmatpush1.msra.mxu0 0.0
    %242 = vmatprep.subr.mxu0 0.0
    %243 = vmatpush1.msra.mxu0 0.0
    %244 = vmatprep.subr.mxu0 0.0
    %245 = vmatpush1.msra.mxu0 0.0
    %246 = vmatprep.subr.mxu0 0.0
    %247 = vmatpush1.msra.mxu0 0.0
    %248 = vmatprep.subr.mxu0 0.0
    %249 = vmatpush1.msra.mxu0 0.0
    %250 = vmatprep.subr.mxu0 0.0
    %251 = vmatpush1.msra.mxu0 0.0
    %252 = vmatprep.subr.mxu0 0.0
    %253 = vmatpush1.msra.mxu0 0.0
    %254 = vmatprep.subr.mxu0 0.0
    %255 = vmatpush1.msra.mxu0 0.0
    %256 = vmatprep.subr.mxu0 0.0
    %257 = vmatpush1.msra.mxu0 0.0
    %258 = vmatprep.mubr.f32.mxu0 0.0
    %259 = vmatmul.mubr.f32.gmra.mrb[0].mxu0 %v114
    %v260 = vpop.f32.mrb[0].mxu0
    %v261 = vadd.f32 %v92, %v260
    %v262 = vpop.f32.mrb[0].mxu0
    %263 = vdwg.mxu0
    %v264 = vlaneseq
    %v265 = vshrl.u32 %v264, 7
    %v266 = vlaneseq
    %v267 = vand.u32 %v266, 127
    %vm268 = vcmp.lt.s32.totalorder %v267, 0
    %v269 = vsub.s32 0, %v267
    %v270 = vsel %vm268, %v269, %v267
    %v271 = vshrl.u32 %v270, 1
    %v272 = vand.u32 %v270, 1
    %v273 = vsub.s32 0, %v272
    %v274 = vsel %vm268, %v273, %v272
    %vm275 = vcmp.ne.s32.totalorder %v274, 0
    %vm276 = vcmp.lt.s32.totalorder %v274, 0
    %vm277 = vmand %vm276, %vm275
    %v278 = vadd.s32 %v274, 2
    %v279 = vsel %vm277, %v278, %v274
    %vm280 = vcmp.eq.s32.totalorder %v279, %v265
    %v281 = vld [vmem:[%s1] sm:$0x1]
    %v283 = vlaneseq
    %v284 = vshrl.u32 %v283, 7
    %v285 = vsub.s32 0, %v284
    %v286 = vrot.slane %v281, %v285
    %v288 = vsel %vm280, 0.0, -10000.0
    %v289 = vsub.f32 %v286, 1.0
    %v290 = vmul.f32 %v289, 10000.0
    %v291 = vadd.f32 %v288, %v290
    %vm292 = vcmp.ge.s32.totalorder %v267, 0
    %vm293 = vcmp.lt.s32.totalorder %v267, 16
    %vm294 = vmand %vm292, %vm293
    %v295 = vsel %vm294, 1.0, 0.0
    %v296 = vmul.f32 %v261, %v295
    %v298 = vsel %vm49, %v296, 0
    %v301 = vsel %vm49, %v186, 0
    %v304 = vsel %vm49, %v191, 0
    %306 = vmatprep.subr.mxu0 0.0
    %307 = vmatpush1.xpose.msra.mxu0 %v301
    %308 = vmatprep.subr.mxu0 0.0
    %309 = vmatpush1.xpose.msra.mxu0 %v304
    %310 = vmatprep.subr.mxu0 0.0
    %311 = vmatpush1.xpose.msra.mxu0 0.0
    %312 = vmatprep.subr.mxu0 0.0
    %313 = vmatpush1.xpose.msra.mxu0 0.0
    %314 = vmatprep.subr.mxu0 0.0
    %315 = vmatpush1.xpose.msra.mxu0 0.0
    %316 = vmatprep.subr.mxu0 0.0
    %317 = vmatpush1.xpose.msra.mxu0 0.0
    %318 = vmatprep.subr.mxu0 0.0
    %319 = vmatpush1.xpose.msra.mxu0 0.0
    %320 = vmatprep.subr.mxu0 0.0
    %321 = vmatpush1.xpose.msra.mxu0 0.0
    %322 = vmatprep.subr.mxu0 0.0
    %323 = vmatpush1.xpose.msra.mxu0 0.0
    %324 = vmatprep.subr.mxu0 0.0
    %325 = vmatpush1.xpose.msra.mxu0 0.0
    %326 = vmatprep.subr.mxu0 0.0
    %327 = vmatpush1.xpose.msra.mxu0 0.0
    %328 = vmatprep.subr.mxu0 0.0
    %329 = vmatpush1.xpose.msra.mxu0 0.0
    %330 = vmatprep.subr.mxu0 0.0
    %331 = vmatpush1.xpose.msra.mxu0 0.0
    %332 = vmatprep.subr.mxu0 0.0
    %333 = vmatpush1.xpose.msra.mxu0 0.0
    %334 = vmatprep.subr.mxu0 0.0
    %335 = vmatpush1.xpose.msra.mxu0 0.0
    %336 = vmatprep.subr.mxu0 0.0
    %337 = vmatpush1.xpose.msra.mxu0 0.0
    %338 = vmatprep.subr.mxu0 0.0
    %339 = vmatpush1.xpose.msra.mxu0 0.0
    %340 = vmatprep.subr.mxu0 0.0
    %341 = vmatpush1.xpose.msra.mxu0 0.0
    %342 = vmatprep.subr.mxu0 0.0
    %343 = vmatpush1.xpose.msra.mxu0 0.0
    %344 = vmatprep.subr.mxu0 0.0
    %345 = vmatpush1.xpose.msra.mxu0 0.0
    %346 = vmatprep.subr.mxu0 0.0
    %347 = vmatpush1.xpose.msra.mxu0 0.0
    %348 = vmatprep.subr.mxu0 0.0
    %349 = vmatpush1.xpose.msra.mxu0 0.0
    %350 = vmatprep.subr.mxu0 0.0
    %351 = vmatpush1.xpose.msra.mxu0 0.0
    %352 = vmatprep.subr.mxu0 0.0
    %353 = vmatpush1.xpose.msra.mxu0 0.0
    %354 = vmatprep.subr.mxu0 0.0
    %355 = vmatpush1.xpose.msra.mxu0 0.0
    %356 = vmatprep.subr.mxu0 0.0
    %357 = vmatpush1.xpose.msra.mxu0 0.0
    %358 = vmatprep.subr.mxu0 0.0
    %359 = vmatpush1.xpose.msra.mxu0 0.0
    %360 = vmatprep.subr.mxu0 0.0
    %361 = vmatpush1.xpose.msra.mxu0 0.0
    %362 = vmatprep.subr.mxu0 0.0
    %363 = vmatpush1.xpose.msra.mxu0 0.0
    %364 = vmatprep.subr.mxu0 0.0
    %365 = vmatpush1.xpose.msra.mxu0 0.0
    %366 = vmatprep.subr.mxu0 0.0
    %367 = vmatpush1.xpose.msra.mxu0 0.0
    %368 = vmatprep.subr.mxu0 0.0
    %369 = vmatpush1.xpose.msra.mxu0 0.0
    %370 = vmatprep.mubr.f32.mxu0 0.0
    %371 = vmatmul.mubr.f32.gmra.mrb[0].mxu0 %v298
    %v372 = vpop.f32.mrb[0].mxu0
    %v373 = vadd.f32 0.0, %v372
    %v374 = vpop.f32.mrb[0].mxu0
    %375 = vdwg.mxu0
    %v376 = vmul.f32 %v373, 0.25
    %v377 = vadd.f32 %v376, %v291
    %vm378 = vcmask 123904
    %v379 = vsel %vm378, %v377, -inf
    %380 = vmax.xlane.f32.xlu0 %v379
    %v381 = vpop.xlane.xlu0 %380
    %v382 = vsub.f32 %v377, %v381
    %v383 = vmul.f32 %v382, 1.442695
    %v384 = vpow.pop %v383
    %v385 = vsel %vm378, %v384, 0.0
    %386 = vadd.xlane.f32.xlu0 %v385
    %v387 = vpop.xlane.xlu0 %386
    %v388 = vrcp.pop %v387
    %v389 = vmul.f32 %v384, %v388
    %391 = vrot.lane.b32.xlu0 %v295, 32
    %v392 = vpop.permute.xlu0 %391
    %v394 = vmul.f32 %v186, %v392
    %v395 = vmul.f32 %v191, %v392
    %vm396 = vcmp.ge.s32.totalorder %v267, 16
    %vm397 = vcmp.lt.s32.totalorder %v267, 32
    %vm398 = vmand %vm396, %vm397
    %v399 = vsel %vm398, 1.0, 0.0
    %v400 = vmul.f32 %v261, %v399
    %v402 = vsel %vm49, %v400, 0
    %404 = vmatprep.subr.mxu0 0.0
    %405 = vmatpush1.xpose.msra.mxu0 %v301
    %406 = vmatprep.subr.mxu0 0.0
    %407 = vmatpush1.xpose.msra.mxu0 %v304
    %408 = vmatprep.subr.mxu0 0.0
    %409 = vmatpush1.xpose.msra.mxu0 0.0
    %410 = vmatprep.subr.mxu0 0.0
    %411 = vmatpush1.xpose.msra.mxu0 0.0
    %412 = vmatprep.subr.mxu0 0.0
    %413 = vmatpush1.xpose.msra.mxu0 0.0
    %414 = vmatprep.subr.mxu0 0.0
    %415 = vmatpush1.xpose.msra.mxu0 0.0
    %416 = vmatprep.subr.mxu0 0.0
    %417 = vmatpush1.xpose.msra.mxu0 0.0
    %418 = vmatprep.subr.mxu0 0.0
    %419 = vmatpush1.xpose.msra.mxu0 0.0
    %420 = vmatprep.subr.mxu0 0.0
    %421 = vmatpush1.xpose.msra.mxu0 0.0
    %422 = vmatprep.subr.mxu0 0.0
    %423 = vmatpush1.xpose.msra.mxu0 0.0
    %424 = vmatprep.subr.mxu0 0.0
    %425 = vmatpush1.xpose.msra.mxu0 0.0
    %426 = vmatprep.subr.mxu0 0.0
    %427 = vmatpush1.xpose.msra.mxu0 0.0
    %428 = vmatprep.subr.mxu0 0.0
    %429 = vmatpush1.xpose.msra.mxu0 0.0
    %430 = vmatprep.subr.mxu0 0.0
    %431 = vmatpush1.xpose.msra.mxu0 0.0
    %432 = vmatprep.subr.mxu0 0.0
    %433 = vmatpush1.xpose.msra.mxu0 0.0
    %434 = vmatprep.subr.mxu0 0.0
    %435 = vmatpush1.xpose.msra.mxu0 0.0
    %436 = vmatprep.subr.mxu0 0.0
    %437 = vmatpush1.xpose.msra.mxu0 0.0
    %438 = vmatprep.subr.mxu0 0.0
    %439 = vmatpush1.xpose.msra.mxu0 0.0
    %440 = vmatprep.subr.mxu0 0.0
    %441 = vmatpush1.xpose.msra.mxu0 0.0
    %442 = vmatprep.subr.mxu0 0.0
    %443 = vmatpush1.xpose.msra.mxu0 0.0
    %444 = vmatprep.subr.mxu0 0.0
    %445 = vmatpush1.xpose.msra.mxu0 0.0
    %446 = vmatprep.subr.mxu0 0.0
    %447 = vmatpush1.xpose.msra.mxu0 0.0
    %448 = vmatprep.subr.mxu0 0.0
    %449 = vmatpush1.xpose.msra.mxu0 0.0
    %450 = vmatprep.subr.mxu0 0.0
    %451 = vmatpush1.xpose.msra.mxu0 0.0
    %452 = vmatprep.subr.mxu0 0.0
    %453 = vmatpush1.xpose.msra.mxu0 0.0
    %454 = vmatprep.subr.mxu0 0.0
    %455 = vmatpush1.xpose.msra.mxu0 0.0
    %456 = vmatprep.subr.mxu0 0.0
    %457 = vmatpush1.xpose.msra.mxu0 0.0
    %458 = vmatprep.subr.mxu0 0.0
    %459 = vmatpush1.xpose.msra.mxu0 0.0
    %460 = vmatprep.subr.mxu0 0.0
    %461 = vmatpush1.xpose.msra.mxu0 0.0
    %462 = vmatprep.subr.mxu0 0.0
    %463 = vmatpush1.xpose.msra.mxu0 0.0
    %464 = vmatprep.subr.mxu0 0.0
    %465 = vmatpush1.xpose.msra.mxu0 0.0
    %466 = vmatprep.subr.mxu0 0.0
    %467 = vmatpush1.xpose.msra.mxu0 0.0
    %468 = vmatprep.mubr.f32.mxu0 0.0
    %469 = vmatmul.mubr.f32.gmra.mrb[0].mxu0 %v402
    %v470 = vpop.f32.mrb[0].mxu0
    %v471 = vadd.f32 0.0, %v470
    %v472 = vpop.f32.mrb[0].mxu0
    %473 = vdwg.mxu0
    %v474 = vmul.f32 %v471, 0.25
    %v475 = vadd.f32 %v474, %v291
    %v476 = vsel %vm378, %v475, -inf
    %477 = vmax.xlane.f32.xlu0 %v476
    %v478 = vpop.xlane.xlu0 %477
    %v479 = vsub.f32 %v475, %v478
    %v480 = vmul.f32 %v479, 1.442695
    %v481 = vpow.pop %v480
    %v482 = vsel %vm378, %v481, 0.0
    %483 = vadd.xlane.f32.xlu0 %v482
    %v484 = vpop.xlane.xlu0 %483
    %v485 = vrcp.pop %v484
    %v486 = vmul.f32 %v481, %v485
    %488 = vrot.lane.b32.xlu0 %v399, 32
    %v489 = vpop.permute.xlu0 %488
    %v491 = vmul.f32 %v186, %v489
    %v492 = vmul.f32 %v191, %v489
    %495 = vrot.lane.b32.xlu0 %v491, 96
    %v496 = vpop.permute.xlu0 %495
    %497 = vrot.lane.b32.xlu0 %v492, 96
    %v498 = vpop.permute.xlu0 %497
    %vm501 = vcmask 130048
    %v503 = vsel %vm501, %v486, 0
    %505 = vmatprep.subr.mxu0 0.0
    %506 = vmatpush1.msra.mxu0 %v496
    %507 = vmatprep.subr.mxu0 0.0
    %508 = vmatpush1.msra.mxu0 %v498
    %509 = vmatprep.subr.mxu0 0.0
    %510 = vmatpush1.msra.mxu0 0.0
    %511 = vmatprep.subr.mxu0 0.0
    %512 = vmatpush1.msra.mxu0 0.0
    %513 = vmatprep.subr.mxu0 0.0
    %514 = vmatpush1.msra.mxu0 0.0
    %515 = vmatprep.subr.mxu0 0.0
    %516 = vmatpush1.msra.mxu0 0.0
    %517 = vmatprep.subr.mxu0 0.0
    %518 = vmatpush1.msra.mxu0 0.0
    %519 = vmatprep.subr.mxu0 0.0
    %520 = vmatpush1.msra.mxu0 0.0
    %521 = vmatprep.subr.mxu0 0.0
    %522 = vmatpush1.msra.mxu0 0.0
    %523 = vmatprep.subr.mxu0 0.0
    %524 = vmatpush1.msra.mxu0 0.0
    %525 = vmatprep.subr.mxu0 0.0
    %526 = vmatpush1.msra.mxu0 0.0
    %527 = vmatprep.subr.mxu0 0.0
    %528 = vmatpush1.msra.mxu0 0.0
    %529 = vmatprep.subr.mxu0 0.0
    %530 = vmatpush1.msra.mxu0 0.0
    %531 = vmatprep.subr.mxu0 0.0
    %532 = vmatpush1.msra.mxu0 0.0
    %533 = vmatprep.subr.mxu0 0.0
    %534 = vmatpush1.msra.mxu0 0.0
    %535 = vmatprep.subr.mxu0 0.0
    %536 = vmatpush1.msra.mxu0 0.0
    %537 = vmatprep.subr.mxu0 0.0
    %538 = vmatpush1.msra.mxu0 0.0
    %539 = vmatprep.subr.mxu0 0.0
    %540 = vmatpush1.msra.mxu0 0.0
    %541 = vmatprep.subr.mxu0 0.0
    %542 = vmatpush1.msra.mxu0 0.0
    %543 = vmatprep.subr.mxu0 0.0
    %544 = vmatpush1.msra.mxu0 0.0
    %545 = vmatprep.subr.mxu0 0.0
    %546 = vmatpush1.msra.mxu0 0.0
    %547 = vmatprep.subr.mxu0 0.0
    %548 = vmatpush1.msra.mxu0 0.0
    %549 = vmatprep.subr.mxu0 0.0
    %550 = vmatpush1.msra.mxu0 0.0
    %551 = vmatprep.subr.mxu0 0.0
    %552 = vmatpush1.msra.mxu0 0.0
    %553 = vmatprep.subr.mxu0 0.0
    %554 = vmatpush1.msra.mxu0 0.0
    %555 = vmatprep.subr.mxu0 0.0
    %556 = vmatpush1.msra.mxu0 0.0
    %557 = vmatprep.subr.mxu0 0.0
    %558 = vmatpush1.msra.mxu0 0.0
    %559 = vmatprep.subr.mxu0 0.0
    %560 = vmatpush1.msra.mxu0 0.0
    %561 = vmatprep.subr.mxu0 0.0
    %562 = vmatpush1.msra.mxu0 0.0
    %563 = vmatprep.subr.mxu0 0.0
    %564 = vmatpush1.msra.mxu0 0.0
    %565 = vmatprep.subr.mxu0 0.0
    %566 = vmatpush1.msra.mxu0 0.0
    %567 = vmatprep.subr.mxu0 0.0
    %568 = vmatpush1.msra.mxu0 0.0
    %569 = vmatprep.mubr.f32.mxu0 0.0
    %570 = vmatmul.mubr.f32.gmra.mrb[0].mxu0 %v503
    %v571 = vpop.f32.mrb[0].mxu0
    %v572 = vadd.f32 0.0, %v571
    %v573 = vpop.f32.mrb[0].mxu0
    %574 = vdwg.mxu0
    %577 = vrot.lane.b32.xlu0 %v394, 96
    %v578 = vpop.permute.xlu0 %577
    %579 = vrot.lane.b32.xlu0 %v395, 96
    %v580 = vpop.permute.xlu0 %579
    %v584 = vsel %vm501, %v389, 0
    %586 = vmatprep.subr.mxu0 0.0
    %587 = vmatpush1.msra.mxu0 %v578
    %588 = vmatprep.subr.mxu0 0.0
    %589 = vmatpush1.msra.mxu0 %v580
    %590 = vmatprep.subr.mxu0 0.0
    %591 = vmatpush1.msra.mxu0 0.0
    %592 = vmatprep.subr.mxu0 0.0
    %593 = vmatpush1.msra.mxu0 0.0
    %594 = vmatprep.subr.mxu0 0.0
    %595 = vmatpush1.msra.mxu0 0.0
    %596 = vmatprep.subr.mxu0 0.0
    %597 = vmatpush1.msra.mxu0 0.0
    %598 = vmatprep.subr.mxu0 0.0
    %599 = vmatpush1.msra.mxu0 0.0
    %600 = vmatprep.subr.mxu0 0.0
    %601 = vmatpush1.msra.mxu0 0.0
    %602 = vmatprep.subr.mxu0 0.0
    %603 = vmatpush1.msra.mxu0 0.0
    %604 = vmatprep.subr.mxu0 0.0
    %605 = vmatpush1.msra.mxu0 0.0
    %606 = vmatprep.subr.mxu0 0.0
    %607 = vmatpush1.msra.mxu0 0.0
    %608 = vmatprep.subr.mxu0 0.0
    %609 = vmatpush1.msra.mxu0 0.0
    %610 = vmatprep.subr.mxu0 0.0
    %611 = vmatpush1.msra.mxu0 0.0
    %612 = vmatprep.subr.mxu0 0.0
    %613 = vmatpush1.msra.mxu0 0.0
    %614 = vmatprep.subr.mxu0 0.0
    %615 = vmatpush1.msra.mxu0 0.0
    %616 = vmatprep.subr.mxu0 0.0
    %617 = vmatpush1.msra.mxu0 0.0
    %618 = vmatprep.subr.mxu0 0.0
    %619 = vmatpush1.msra.mxu0 0.0
    %620 = vmatprep.subr.mxu0 0.0
    %621 = vmatpush1.msra.mxu0 0.0
    %622 = vmatprep.subr.mxu0 0.0
    %623 = vmatpush1.msra.mxu0 0.0
    %624 = vmatprep.subr.mxu0 0.0
    %625 = vmatpush1.msra.mxu0 0.0
    %626 = vmatprep.subr.mxu0 0.0
    %627 = vmatpush1.msra.mxu0 0.0
    %628 = vmatprep.subr.mxu0 0.0
    %629 = vmatpush1.msra.mxu0 0.0
    %630 = vmatprep.subr.mxu0 0.0
    %631 = vmatpush1.msra.mxu0 0.0
    %632 = vmatprep.subr.mxu0 0.0
    %633 = vmatpush1.msra.mxu0 0.0
    %634 = vmatprep.subr.mxu0 0.0
    %635 = vmatpush1.msra.mxu0 0.0
    %636 = vmatprep.subr.mxu0 0.0
    %637 = vmatpush1.msra.mxu0 0.0
    %638 = vmatprep.subr.mxu0 0.0
    %639 = vmatpush1.msra.mxu0 0.0
    %640 = vmatprep.subr.mxu0 0.0
    %641 = vmatpush1.msra.mxu0 0.0
    %642 = vmatprep.subr.mxu0 0.0
    %643 = vmatpush1.msra.mxu0 0.0
    %644 = vmatprep.subr.mxu0 0.0
    %645 = vmatpush1.msra.mxu0 0.0
    %646 = vmatprep.subr.mxu0 0.0
    %647 = vmatpush1.msra.mxu0 0.0
    %648 = vmatprep.subr.mxu0 0.0
    %649 = vmatpush1.msra.mxu0 0.0
    %650 = vmatprep.mubr.f32.mxu0 0.0
    %651 = vmatmul.mubr.f32.gmra.mrb[0].mxu0 %v584
    %v652 = vpop.f32.mrb[0].mxu0
    %v653 = vadd.f32 %v572, %v652
    %v654 = vpop.f32.mrb[0].mxu0
    %655 = vdwg.mxu0
    %v656 = vlaneseq
    %v657 = vshrl.u32 %v656, 7
    %v658 = vsub.s32 0, %v657
    %v659 = vrot.slane %v41, %v658
    %660 = vrot.lane.b32.xlu0 %v27, 32
    %v661 = vpop.permute.xlu0 %660
    %662 = vrot.lane.b32.xlu0 %v28, 32
    %v663 = vpop.permute.xlu0 %662
    %664 = vrot.lane.b32.xlu0 %v29, 32
    %v665 = vpop.permute.xlu0 %664
    %666 = vrot.lane.b32.xlu0 %v30, 32
    %v667 = vpop.permute.xlu0 %666
    %v673 = vsel %vm49, %v653, 0
    %675 = vmatprep.subr.mxu0 0.0
    %676 = vmatpush1.msra.mxu0 %v661
    %677 = vmatprep.subr.mxu0 0.0
    %678 = vmatpush1.msra.mxu0 %v663
    %679 = vmatprep.subr.mxu0 0.0
    %680 = vmatpush1.msra.mxu0 %v665
    %681 = vmatprep.subr.mxu0 0.0
    %682 = vmatpush1.msra.mxu0 %v667
    %683 = vmatprep.subr.mxu0 0.0
    %684 = vmatpush1.msra.mxu0 0.0
    %685 = vmatprep.subr.mxu0 0.0
    %686 = vmatpush1.msra.mxu0 0.0
    %687 = vmatprep.subr.mxu0 0.0
    %688 = vmatpush1.msra.mxu0 0.0
    %689 = vmatprep.subr.mxu0 0.0
    %690 = vmatpush1.msra.mxu0 0.0
    %691 = vmatprep.subr.mxu0 0.0
    %692 = vmatpush1.msra.mxu0 0.0
    %693 = vmatprep.subr.mxu0 0.0
    %694 = vmatpush1.msra.mxu0 0.0
    %695 = vmatprep.subr.mxu0 0.0
    %696 = vmatpush1.msra.mxu0 0.0
    %697 = vmatprep.subr.mxu0 0.0
    %698 = vmatpush1.msra.mxu0 0.0
    %699 = vmatprep.subr.mxu0 0.0
    %700 = vmatpush1.msra.mxu0 0.0
    %701 = vmatprep.subr.mxu0 0.0
    %702 = vmatpush1.msra.mxu0 0.0
    %703 = vmatprep.subr.mxu0 0.0
    %704 = vmatpush1.msra.mxu0 0.0
    %705 = vmatprep.subr.mxu0 0.0
    %706 = vmatpush1.msra.mxu0 0.0
    %707 = vmatprep.subr.mxu0 0.0
    %708 = vmatpush1.msra.mxu0 0.0
    %709 = vmatprep.subr.mxu0 0.0
    %710 = vmatpush1.msra.mxu0 0.0
    %711 = vmatprep.subr.mxu0 0.0
    %712 = vmatpush1.msra.mxu0 0.0
    %713 = vmatprep.subr.mxu0 0.0
    %714 = vmatpush1.msra.mxu0 0.0
    %715 = vmatprep.subr.mxu0 0.0
    %716 = vmatpush1.msra.mxu0 0.0
    %717 = vmatprep.subr.mxu0 0.0
    %718 = vmatpush1.msra.mxu0 0.0
    %719 = vmatprep.subr.mxu0 0.0
    %720 = vmatpush1.msra.mxu0 0.0
    %721 = vmatprep.subr.mxu0 0.0
    %722 = vmatpush1.msra.mxu0 0.0
    %723 = vmatprep.subr.mxu0 0.0
    %724 = vmatpush1.msra.mxu0 0.0
    %725 = vmatprep.subr.mxu0 0.0
    %726 = vmatpush1.msra.mxu0 0.0
    %727 = vmatprep.subr.mxu0 0.0
    %728 = vmatpush1.msra.mxu0 0.0
    %729 = vmatprep.subr.mxu0 0.0
    %730 = vmatpush1.msra.mxu0 0.0
    %731 = vmatprep.subr.mxu0 0.0
    %732 = vmatpush1.msra.mxu0 0.0
    %733 = vmatprep.subr.mxu0 0.0
    %734 = vmatpush1.msra.mxu0 0.0
    %735 = vmatprep.subr.mxu0 0.0
    %736 = vmatpush1.msra.mxu0 0.0
    %737 = vmatprep.subr.mxu0 0.0
    %738 = vmatpush1.msra.mxu0 0.0
    %739 = vmatprep.mubr.f32.mxu0 0.0
    %740 = vmatmul.mubr.f32.gmra.mrb[0].mxu0 %v673
    %v741 = vpop.f32.mrb[0].mxu0
    %v742 = vadd.f32 %v659, %v741
    %v743 = vpop.f32.mrb[0].mxu0
    %744 = vdwg.mxu0
    %v745 = vadd.f32 %v87, %v742
    %vm746 = vcmask 254976
    %v747 = vsel %vm746, %v745, 0.0
    %748 = vadd.xlane.f32.xlu0 %v747
    %v749 = vpop.xlane.xlu0 %748
    %v750 = vmul.f32 %v749, %v56
    %v751 = vsub.f32 %v745, %v750
    %v752 = vmul.f32 %v751, %v751
    %v753 = vsel %vm746, %v752, 0.0
    %754 = vadd.xlane.f32.xlu0 %v753
    %v755 = vpop.xlane.xlu0 %754
    %v756 = vmul.f32 %v755, %v56
    %v757 = vadd.f32 %v756, 1e-12
    %v758 = vrsqrt.pop %v757
    %v759 = vmul.f32 %v751, %v758
    %v760 = vlaneseq
    %v761 = vshrl.u32 %v760, 7
    %v762 = vsub.s32 0, %v761
    %v763 = vrot.slane %v37, %v762
    %v764 = vmul.f32 %v759, %v763
    %v765 = vlaneseq
    %v766 = vshrl.u32 %v765, 7
    %v767 = vsub.s32 0, %v766
    %v768 = vrot.slane %v38, %v767
    %v769 = vadd.f32 %v764, %v768
    %v770 = vlaneseq
    %v771 = vshrl.u32 %v770, 7
    %v772 = vsub.s32 0, %v771
    %v773 = vrot.slane %v45, %v772
    %v775 = vsel %vm49, %v769, 0
    %777 = vmatprep.subr.mxu0 0.0
    %778 = vmatpush1.msra.mxu0 %v31
    %779 = vmatprep.subr.mxu0 0.0
    %780 = vmatpush1.msra.mxu0 %v32
    %781 = vmatprep.subr.mxu0 0.0
    %782 = vmatpush1.msra.mxu0 %v33
    %783 = vmatprep.subr.mxu0 0.0
    %784 = vmatpush1.msra.mxu0 %v34
    %785 = vmatprep.subr.mxu0 0.0
    %786 = vmatpush1.msra.mxu0 0.0
    %787 = vmatprep.subr.mxu0 0.0
    %788 = vmatpush1.msra.mxu0 0.0
    %789 = vmatprep.subr.mxu0 0.0
    %790 = vmatpush1.msra.mxu0 0.0
    %791 = vmatprep.subr.mxu0 0.0
    %792 = vmatpush1.msra.mxu0 0.0
    %793 = vmatprep.subr.mxu0 0.0
    %794 = vmatpush1.msra.mxu0 0.0
    %795 = vmatprep.subr.mxu0 0.0
    %796 = vmatpush1.msra.mxu0 0.0
    %797 = vmatprep.subr.mxu0 0.0
    %798 = vmatpush1.msra.mxu0 0.0
    %799 = vmatprep.subr.mxu0 0.0
    %800 = vmatpush1.msra.mxu0 0.0
    %801 = vmatprep.subr.mxu0 0.0
    %802 = vmatpush1.msra.mxu0 0.0
    %803 = vmatprep.subr.mxu0 0.0
    %804 = vmatpush1.msra.mxu0 0.0
    %805 = vmatprep.subr.mxu0 0.0
    %806 = vmatpush1.msra.mxu0 0.0
    %807 = vmatprep.subr.mxu0 0.0
    %808 = vmatpush1.msra.mxu0 0.0
    %809 = vmatprep.subr.mxu0 0.0
    %810 = vmatpush1.msra.mxu0 0.0
    %811 = vmatprep.subr.mxu0 0.0
    %812 = vmatpush1.msra.mxu0 0.0
    %813 = vmatprep.subr.mxu0 0.0
    %814 = vmatpush1.msra.mxu0 0.0
    %815 = vmatprep.subr.mxu0 0.0
    %816 = vmatpush1.msra.mxu0 0.0
    %817 = vmatprep.subr.mxu0 0.0
    %818 = vmatpush1.msra.mxu0 0.0
    %819 = vmatprep.subr.mxu0 0.0
    %820 = vmatpush1.msra.mxu0 0.0
    %821 = vmatprep.subr.mxu0 0.0
    %822 = vmatpush1.msra.mxu0 0.0
    %823 = vmatprep.subr.mxu0 0.0
    %824 = vmatpush1.msra.mxu0 0.0
    %825 = vmatprep.subr.mxu0 0.0
    %826 = vmatpush1.msra.mxu0 0.0
    %827 = vmatprep.subr.mxu0 0.0
    %828 = vmatpush1.msra.mxu0 0.0
    %829 = vmatprep.subr.mxu0 0.0
    %830 = vmatpush1.msra.mxu0 0.0
    %831 = vmatprep.subr.mxu0 0.0
    %832 = vmatpush1.msra.mxu0 0.0
    %833 = vmatprep.subr.mxu0 0.0
    %834 = vmatpush1.msra.mxu0 0.0
    %835 = vmatprep.subr.mxu0 0.0
    %836 = vmatpush1.msra.mxu0 0.0
    %837 = vmatprep.subr.mxu0 0.0
    %838 = vmatpush1.msra.mxu0 0.0
    %839 = vmatprep.subr.mxu0 0.0
    %840 = vmatpush1.msra.mxu0 0.0
    %841 = vmatprep.mubr.f32.mxu0 0.0
    %842 = vmatmul.mubr.f32.gmra.mrb[0].mxu0 %v775
    %v843 = vpop.f32.mrb[0].mxu0
    %v844 = vadd.f32 %v773, %v843
    %v845 = vpop.f32.mrb[0].mxu0
    %846 = vdwg.mxu0
    %v847 = vmul.f32 %v844, %v844
    %v848 = vmul.f32 %v844, %v847
    %v849 = vmul.f32 %v848, 0.044715
    %v850 = vadd.f32 %v844, %v849
    %v851 = vmul.f32 %v850, 0.7978846
    %v852 = vtanh.pop %v851
    %v853 = vadd.f32 %v852, 1.0
    %v854 = vmul.f32 %v853, 0.5
    %v855 = vmul.f32 %v844, %v854
    %v856 = vld [vmem:[%s4] sm:$0xff]
    %v857 = vld [vmem:[%s4 + $0x8] sm:$0xff]
    %v858 = vld [vmem:[%s4 + $0x10] sm:$0xff]
    %v859 = vld [vmem:[%s4 + $0x18] sm:$0xff]
    %v860 = vld [vmem:[%s4 + $0x20] sm:$0xff]
    %v861 = vld [vmem:[%s4 + $0x28] sm:$0xff]
    %v862 = vld [vmem:[%s4 + $0x30] sm:$0xff]
    %v863 = vld [vmem:[%s4 + $0x38] sm:$0xff]
    %v864 = vlaneseq
    %v865 = vshrl.u32 %v864, 7
    %v866 = vsub.s32 0, %v865
    %v867 = vrot.slane %v42, %v866
    %vm868 = vcmask 523264
    %v870 = vsel %vm868, %v855, 0
    %872 = vmatprep.subr.mxu0 0.0
    %873 = vmatpush1.msra.mxu0 %v856
    %874 = vmatprep.subr.mxu0 0.0
    %875 = vmatpush1.msra.mxu0 %v857
    %876 = vmatprep.subr.mxu0 0.0
    %877 = vmatpush1.msra.mxu0 %v858
    %878 = vmatprep.subr.mxu0 0.0
    %879 = vmatpush1.msra.mxu0 %v859
    %880 = vmatprep.subr.mxu0 0.0
    %881 = vmatpush1.msra.mxu0 %v860
    %882 = vmatprep.subr.mxu0 0.0
    %883 = vmatpush1.msra.mxu0 %v861
    %884 = vmatprep.subr.mxu0 0.0
    %885 = vmatpush1.msra.mxu0 %v862
    %886 = vmatprep.subr.mxu0 0.0
    %887 = vmatpush1.msra.mxu0 %v863
    %888 = vmatprep.subr.mxu0 0.0
    %889 = vmatpush1.msra.mxu0 0.0
    %890 = vmatprep.subr.mxu0 0.0
    %891 = vmatpush1.msra.mxu0 0.0
    %892 = vmatprep.subr.mxu0 0.0
    %893 = vmatpush1.msra.mxu0 0.0
    %894 = vmatprep.subr.mxu0 0.0
    %895 = vmatpush1.msra.mxu0 0.0
    %896 = vmatprep.subr.mxu0 0.0
    %897 = vmatpush1.msra.mxu0 0.0
    %898 = vmatprep.subr.mxu0 0.0
    %899 = vmatpush1.msra.mxu0 0.0
    %900 = vmatprep.subr.mxu0 0.0
    %901 = vmatpush1.msra.mxu0 0.0
    %902 = vmatprep.subr.mxu0 0.0
    %903 = vmatpush1.msra.mxu0 0.0
    %904 = vmatprep.subr.mxu0 0.0
    %905 = vmatpush1.msra.mxu0 0.0
    %906 = vmatprep.subr.mxu0 0.0
    %907 = vmatpush1.msra.mxu0 0.0
    %908 = vmatprep.subr.mxu0 0.0
    %909 = vmatpush1.msra.mxu0 0.0
    %910 = vmatprep.subr.mxu0 0.0
    %911 = vmatpush1.msra.mxu0 0.0
    %912 = vmatprep.subr.mxu0 0.0
    %913 = vmatpush1.msra.mxu0 0.0
    %914 = vmatprep.subr.mxu0 0.0
    %915 = vmatpush1.msra.mxu0 0.0
    %916 = vmatprep.subr.mxu0 0.0
    %917 = vmatpush1.msra.mxu0 0.0
    %918 = vmatprep.subr.mxu0 0.0
    %919 = vmatpush1.msra.mxu0 0.0
    %920 = vmatprep.subr.mxu0 0.0
    %921 = vmatpush1.msra.mxu0 0.0
    %922 = vmatprep.subr.mxu0 0.0
    %923 = vmatpush1.msra.mxu0 0.0
    %924 = vmatprep.subr.mxu0 0.0
    %925 = vmatpush1.msra.mxu0 0.0
    %926 = vmatprep.subr.mxu0 0.0
    %927 = vmatpush1.msra.mxu0 0.0
    %928 = vmatprep.subr.mxu0 0.0
    %929 = vmatpush1.msra.mxu0 0.0
    %930 = vmatprep.subr.mxu0 0.0
    %931 = vmatpush1.msra.mxu0 0.0
    %932 = vmatprep.subr.mxu0 0.0
    %933 = vmatpush1.msra.mxu0 0.0
    %934 = vmatprep.subr.mxu0 0.0
    %935 = vmatpush1.msra.mxu0 0.0
    %936 = vmatprep.mubr.f32.mxu0 0.0
    %937 = vmatmul.mubr.f32.gmra.mrb[0].mxu0 %v870
    %v938 = vpop.f32.mrb[0].mxu0
    %v939 = vadd.f32 %v867, %v938
    %v940 = vpop.f32.mrb[0].mxu0
    %941 = vdwg.mxu0
    %v942 = vadd.f32 %v769, %v939
    %v943 = vsel %vm746, %v942, 0.0
    %944 = vadd.xlane.f32.xlu0 %v943
    %v945 = vpop.xlane.xlu0 %944
    %v946 = vmul.f32 %v945, %v56
    %v947 = vsub.f32 %v942, %v946
    %v948 = vmul.f32 %v947, %v947
    %v949 = vsel %vm746, %v948, 0.0
    %950 = vadd.xlane.f32.xlu0 %v949
    %v951 = vpop.xlane.xlu0 %950
    %v952 = vmul.f32 %v951, %v56
    %v953 = vadd.f32 %v952, 1e-12
    %v954 = vrsqrt.pop %v953
    %v955 = vmul.f32 %v947, %v954
    %v956 = vlaneseq
    %v957 = vshrl.u32 %v956, 7
    %v958 = vsub.s32 0, %v957
    %v959 = vrot.slane %v39, %v958
    %v960 = vmul.f32 %v955, %v959
    %v961 = vlaneseq
    %v962 = vshrl.u32 %v961, 7
    %v963 = vsub.s32 0, %v962
    %v964 = vrot.slane %v40, %v963
    %v965 = vadd.f32 %v960, %v964
    %v966 = vlaneseq
    %v967 = vshrl.u32 %v966, 7
    %v968 = vsub.s32 0, %v967
    %v969 = vrot.slane %v43, %v968
    %974 = vrot.lane.b32.xlu0 %v31, 64
    %v975 = vpop.permute.xlu0 %974
    %976 = vrot.lane.b32.xlu0 %v32, 64
    %v977 = vpop.permute.xlu0 %976
    %978 = vrot.lane.b32.xlu0 %v33, 64
    %v979 = vpop.permute.xlu0 %978
    %980 = vrot.lane.b32.xlu0 %v34, 64
    %v981 = vpop.permute.xlu0 %980
    %v987 = vsel %vm49, %v965, 0
    %989 = vmatprep.subr.mxu0 0.0
    %990 = vmatpush1.msra.mxu0 %v975
    %991 = vmatprep.subr.mxu0 0.0
    %992 = vmatpush1.msra.mxu0 %v977
    %993 = vmatprep.subr.mxu0 0.0
    %994 = vmatpush1.msra.mxu0 %v979
    %995 = vmatprep.subr.mxu0 0.0
    %996 = vmatpush1.msra.mxu0 %v981
    %997 = vmatprep.subr.mxu0 0.0
    %998 = vmatpush1.msra.mxu0 0.0
    %999 = vmatprep.subr.mxu0 0.0
    %1000 = vmatpush1.msra.mxu0 0.0
    %1001 = vmatprep.subr.mxu0 0.0
    %1002 = vmatpush1.msra.mxu0 0.0
    %1003 = vmatprep.subr.mxu0 0.0
    %1004 = vmatpush1.msra.mxu0 0.0
    %1005 = vmatprep.subr.mxu0 0.0
    %1006 = vmatpush1.msra.mxu0 0.0
    %1007 = vmatprep.subr.mxu0 0.0
    %1008 = vmatpush1.msra.mxu0 0.0
    %1009 = vmatprep.subr.mxu0 0.0
    %1010 = vmatpush1.msra.mxu0 0.0
    %1011 = vmatprep.subr.mxu0 0.0
    %1012 = vmatpush1.msra.mxu0 0.0
    %1013 = vmatprep.subr.mxu0 0.0
    %1014 = vmatpush1.msra.mxu0 0.0
    %1015 = vmatprep.subr.mxu0 0.0
    %1016 = vmatpush1.msra.mxu0 0.0
    %1017 = vmatprep.subr.mxu0 0.0
    %1018 = vmatpush1.msra.mxu0 0.0
    %1019 = vmatprep.subr.mxu0 0.0
    %1020 = vmatpush1.msra.mxu0 0.0
    %1021 = vmatprep.subr.mxu0 0.0
    %1022 = vmatpush1.msra.mxu0 0.0
    %1023 = vmatprep.subr.mxu0 0.0
    %1024 = vmatpush1.msra.mxu0 0.0
    %1025 = vmatprep.subr.mxu0 0.0
    %1026 = vmatpush1.msra.mxu0 0.0
    %1027 = vmatprep.subr.mxu0 0.0
    %1028 = vmatpush1.msra.mxu0 0.0
    %1029 = vmatprep.subr.mxu0 0.0
    %1030 = vmatpush1.msra.mxu0 0.0
    %1031 = vmatprep.subr.mxu0 0.0
    %1032 = vmatpush1.msra.mxu0 0.0
    %1033 = vmatprep.subr.mxu0 0.0
    %1034 = vmatpush1.msra.mxu0 0.0
    %1035 = vmatprep.subr.mxu0 0.0
    %1036 = vmatpush1.msra.mxu0 0.0
    %1037 = vmatprep.subr.mxu0 0.0
    %1038 = vmatpush1.msra.mxu0 0.0
    %1039 = vmatprep.subr.mxu0 0.0
    %1040 = vmatpush1.msra.mxu0 0.0
    %1041 = vmatprep.subr.mxu0 0.0
    %1042 = vmatpush1.msra.mxu0 0.0
    %1043 = vmatprep.subr.mxu0 0.0
    %1044 = vmatpush1.msra.mxu0 0.0
    %1045 = vmatprep.subr.mxu0 0.0
    %1046 = vmatpush1.msra.mxu0 0.0
    %1047 = vmatprep.subr.mxu0 0.0
    %1048 = vmatpush1.msra.mxu0 0.0
    %1049 = vmatprep.subr.mxu0 0.0
    %1050 = vmatpush1.msra.mxu0 0.0
    %1051 = vmatprep.subr.mxu0 0.0
    %1052 = vmatpush1.msra.mxu0 0.0
    %1053 = vmatprep.mubr.f32.mxu0 0.0
    %1054 = vmatmul.mubr.f32.gmra.mrb[0].mxu0 %v987
    %v1055 = vpop.f32.mrb[0].mxu0
    %v1056 = vadd.f32 %v969, %v1055
    %v1057 = vpop.f32.mrb[0].mxu0
    %1058 = vdwg.mxu0
    %v1059 = vtanh.pop %v1056
    %v1060 = vlaneseq
    %v1061 = vshrl.u32 %v1060, 7
    %v1062 = vsub.s32 0, %v1061
    %v1063 = vrot.slane %v46, %v1062
    %1064 = vrot.lane.b32.xlu0 %v31, 32
    %v1065 = vpop.permute.xlu0 %1064
    %1066 = vrot.lane.b32.xlu0 %v32, 32
    %v1067 = vpop.permute.xlu0 %1066
    %1068 = vrot.lane.b32.xlu0 %v33, 32
    %v1069 = vpop.permute.xlu0 %1068
    %1070 = vrot.lane.b32.xlu0 %v34, 32
    %v1071 = vpop.permute.xlu0 %1070
    %v1077 = vsel %vm49, %v1059, 0
    %1079 = vmatprep.subr.mxu0 0.0
    %1080 = vmatpush1.msra.mxu0 %v1065
    %1081 = vmatprep.subr.mxu0 0.0
    %1082 = vmatpush1.msra.mxu0 %v1067
    %1083 = vmatprep.subr.mxu0 0.0
    %1084 = vmatpush1.msra.mxu0 %v1069
    %1085 = vmatprep.subr.mxu0 0.0
    %1086 = vmatpush1.msra.mxu0 %v1071
    %1087 = vmatprep.subr.mxu0 0.0
    %1088 = vmatpush1.msra.mxu0 0.0
    %1089 = vmatprep.subr.mxu0 0.0
    %1090 = vmatpush1.msra.mxu0 0.0
    %1091 = vmatprep.subr.mxu0 0.0
    %1092 = vmatpush1.msra.mxu0 0.0
    %1093 = vmatprep.subr.mxu0 0.0
    %1094 = vmatpush1.msra.mxu0 0.0
    %1095 = vmatprep.subr.mxu0 0.0
    %1096 = vmatpush1.msra.mxu0 0.0
    %1097 = vmatprep.subr.mxu0 0.0
    %1098 = vmatpush1.msra.mxu0 0.0
    %1099 = vmatprep.subr.mxu0 0.0
    %1100 = vmatpush1.msra.mxu0 0.0
    %1101 = vmatprep.subr.mxu0 0.0
    %1102 = vmatpush1.msra.mxu0 0.0
    %1103 = vmatprep.subr.mxu0 0.0
    %1104 = vmatpush1.msra.mxu0 0.0
    %1105 = vmatprep.subr.mxu0 0.0
    %1106 = vmatpush1.msra.mxu0 0.0
    %1107 = vmatprep.subr.mxu0 0.0
    %1108 = vmatpush1.msra.mxu0 0.0
    %1109 = vmatprep.subr.mxu0 0.0
    %1110 = vmatpush1.msra.mxu0 0.0
    %1111 = vmatprep.subr.mxu0 0.0
    %1112 = vmatpush1.msra.mxu0 0.0
    %1113 = vmatprep.subr.mxu0 0.0
    %1114 = vmatpush1.msra.mxu0 0.0
    %1115 = vmatprep.subr.mxu0 0.0
    %1116 = vmatpush1.msra.mxu0 0.0
    %1117 = vmatprep.subr.mxu0 0.0
    %1118 = vmatpush1.msra.mxu0 0.0
    %1119 = vmatprep.subr.mxu0 0.0
    %1120 = vmatpush1.msra.mxu0 0.0
    %1121 = vmatprep.subr.mxu0 0.0
    %1122 = vmatpush1.msra.mxu0 0.0
    %1123 = vmatprep.subr.mxu0 0.0
    %1124 = vmatpush1.msra.mxu0 0.0
    %1125 = vmatprep.subr.mxu0 0.0
    %1126 = vmatpush1.msra.mxu0 0.0
    %1127 = vmatprep.subr.mxu0 0.0
    %1128 = vmatpush1.msra.mxu0 0.0
    %1129 = vmatprep.subr.mxu0 0.0
    %1130 = vmatpush1.msra.mxu0 0.0
    %1131 = vmatprep.subr.mxu0 0.0
    %1132 = vmatpush1.msra.mxu0 0.0
    %1133 = vmatprep.subr.mxu0 0.0
    %1134 = vmatpush1.msra.mxu0 0.0
    %1135 = vmatprep.subr.mxu0 0.0
    %1136 = vmatpush1.msra.mxu0 0.0
    %1137 = vmatprep.subr.mxu0 0.0
    %1138 = vmatpush1.msra.mxu0 0.0
    %1139 = vmatprep.subr.mxu0 0.0
    %1140 = vmatpush1.msra.mxu0 0.0
    %1141 = vmatprep.subr.mxu0 0.0
    %1142 = vmatpush1.msra.mxu0 0.0
    %1143 = vmatprep.mubr.f32.mxu0 0.0
    %1144 = vmatmul.mubr.f32.gmra.mrb[0].mxu0 %v1077
    %v1145 = vpop.f32.mrb[0].mxu0
    %v1146 = vadd.f32 %v1063, %v1145
    %v1147 = vpop.f32.mrb[0].mxu0
    %1148 = vdwg.mxu0
    %v1149 = vsel %vm378, %v1146, -inf
    %1150 = vmax.xlane.f32.xlu0 %v1149
    %v1151 = vpop.xlane.xlu0 %1150
    %v1152 = vsub.f32 %v1146, %v1151
    %v1153 = vmul.f32 %v1152, 1.442695
    %v1154 = vpow.pop %v1153
    %v1155 = vsel %vm378, %v1154, 0.0
    %1156 = vadd.xlane.f32.xlu0 %v1155
    %v1157 = vpop.xlane.xlu0 %1156
    %v1158 = vrcp.pop %v1157
    %vm1159 = vcmp.eq.f32.partialorder %v1146, %v1151
    %v1160 = vsel %vm1159, %v267, 16
    %v1161 = vsel %vm378, %v1160, 2147483647
    %v1162 = vand.u32 %v1161, 65535
    %v1163 = vshra.s32 %v1161, 16
    %v1164 = vcvt.s32.f32 %v1162
    %v1165 = vcvt.s32.f32 %v1163
    %1166 = vmin.xlane.f32.xlu0 %v1165
    %v1167 = vpop.xlane.xlu0 %1166
    %vm1168 = vcmp.eq.f32.partialorder %v1165, %v1167
    %v1169 = vsel %vm1168, %v1164, inf
    %1170 = vmin.xlane.f32.xlu0 %v1169
    %v1171 = vpop.xlane.xlu0 %1170
    %v1172 = vcvt.f32.s32 %v1171
    %v1173 = vcvt.f32.s32 %v1167
    %v1174 = vshll.u32 %v1173, 16
    %v1175 = vadd.s32 %v1174, %v1172
    %v1176 = vlog2.pop %v1157
    %v1177 = vmul.f32 %v1176, 0.6931472
    %v1178 = vadd.f32 %v1151, %v1177
    %v1179 = vld [vmem:[%s2] sm:$0x3]
    %v1180 = vmul.f32 %v1179, %v1146
    %v1181 = vsel %vm378, %v1180, 0.0
    %1182 = vadd.xlane.f32.xlu0 %v1181
    %v1183 = vpop.xlane.xlu0 %1182
    %v1184 = vsub.f32 %v1178, %v1183
    %vm1185 = vcmask 1024
    %v1186 = vsel %vm1185, %v1184, 0.0
    %1187 = vadd.xlane.f32.xlu0 %v1186
    %v1188 = vpop.xlane.xlu0 %1187
    %v1189 = vrot.slane %v1188, 4
    %v1190 = vadd.f32 %v1188, %v1189
    %v1191 = vrot.slane %v1190, 2
    %v1192 = vadd.f32 %v1190, %v1191
    %v1193 = vrot.slane %v1192, 1
    %v1194 = vadd.f32 %v1192, %v1193
    %s1195 = vtos %v1194
    %v1196 = vstv %s1195
    %v1197 = vrcp.pop 2.0
    %v1198 = vmul.f32 %v1196, %v1197
    %v1199 = vcvt.s32.f32 %v1175
    %vm1200 = vcmask 7168
    %v1201 = vsel %vm1200, %v1158, %v1199
    %vm1202 = vcmask 15360
    %v1203 = vsel %vm1202, %v1201, %v1198
    %1204 = vst [vmem:[#allocation2] sm:$0xff] 0.0
    %vm1205 = vcmask 17408
    %1206 = vst.msk [vmem:[#allocation2] sm:$0x3] %vm1205, %v1203
    // Predicated region
    $region30: #{tpu_custom_call.1} parent=1 // pred_check
      _
    $region31: #{tpu_custom_call.1} parent=1 // pred_check_branch
      %1208 = sbr.rel (0) target = $region33
    $region32: #{tpu_custom_call.1} parent=1 // pred_region
      %s1210 = ssub.s32 128, 128
      %1211 = vsyncadd [#allocation3], %s1210
      %s1213 = sshll.u32 [#allocation2], 4
      %s1214 = int_to_ptr.vmem [resolvable:$true] %s1213
      %1216 = dma.vmem_to_hbm [thread:$0]  %s1214, 128, %s7, [#allocation3]
    $region33: #{tpu_custom_call.1} parent=1 // pred_fallthru
      _
    // Predicated region
    $region34: #{tpu_custom_call.1} parent=1 // pred_check
      _
    $region35: #{tpu_custom_call.1} parent=1 // pred_check_branch
      %1218 = sbr.rel (0) target = $region37
    $region36: #{tpu_custom_call.1} parent=1 // pred_region
      %1219 = dma.done [#allocation3], 128
    $region37: #{tpu_custom_call.1} parent=1 // pred_fallthru
      _
    %1220 = vsyncpa [#allocation3], 1

</llo_original>
